<compile_context>
chip_gen: v6e
topology: v6e:2x2x1
jax: 0.10.0
libtpu: 0.0.40
codegen_flags: <defaults>
</compile_context>

<pallas_src>
import math

import jax
import jax.numpy as jnp
from jax.experimental import pallas as pl
from jax.experimental.pallas import tpu as pltpu

LANE = 128


def calculate_theta2(d):
    """Closed-form version of the sympy/scipy beta-polynomial coefficients.

    thetas[i][j] = coeff of x**j in (x/2)**i * (1-x/2)**(d-i) / Beta(i+1, d+1-i)
    """
    thetas = []
    for i in range(d + 1):
        inv_beta = math.factorial(d + 1) / (math.factorial(i) * math.factorial(d - i))
        coeffs = []
        for j in range(d + 1):
            if j < i:
                coeffs.append(0.0)
            else:
                c = math.comb(d - i, j - i) * ((-1.0) ** (j - i)) / (2.0 ** j)
                coeffs.append(float(c * inv_beta))
        thetas.append(coeffs)
    return thetas


def bwgnn_kernel(feat_ref, ahat_ref, w1_ref, b1_ref, w2_ref, b2_ref,
                 w3k_ref, b3_ref, out_ref,
                 x_a, x_b, out_acc, lap_acc):
    """Grid = (num_k, row_tiles, col_tiles); col_tiles is the A_hat reduction axis.

    k == 0 : x_0 = h = ReLU(ReLU(feat@W1+b1)@W2+b2); out_acc = h @ W3_eff[0]
    k >= 1 : x_k = x_{k-1} - A_hat @ x_{k-1} (tiled over col panels),
             out_acc += x_k @ W3_eff[k]
    x_{k-1}/x_k ping-pong between two full-height VMEM scratch buffers.
    """
    f32 = jnp.float32
    k = pl.program_id(0)
    i = pl.program_id(1)
    j = pl.program_id(2)
    nj = pl.num_programs(2)

    tm = out_ref.shape[0]
    tn = ahat_ref.shape[1]
    row0 = pl.multiple_of(i * tm, tm)
    col0 = pl.multiple_of(j * tn, tn)

    w3_k = w3k_ref[0]                       # (H_p, H_p) fused output weight for step k

    def write_out():
        # linear3 bias -> ReLU -> (dropout = identity). Written once per (k, i) visit;
        # the final k pass leaves the correct result in HBM.
        out_ref[...] = jnp.maximum(out_acc[pl.ds(row0, tm), :] + b3_ref[...], 0.0)

    # ---------------- k == 0 : MLP + first fused-output term --------------------
    @pl.when((k == 0) & (j == 0))
    def _():
        h = jnp.dot(feat_ref[...], w1_ref[...], preferred_element_type=f32) + b1_ref[...]
        h = jnp.maximum(h, 0.0)             # ReLU (dropout = identity)
        h = jnp.dot(h, w2_ref[...], preferred_element_type=f32) + b2_ref[...]
        h = jnp.maximum(h, 0.0)
        x_a[pl.ds(row0, tm), :] = h
        out_acc[pl.ds(row0, tm), :] = jnp.dot(h, w3_k, preferred_element_type=f32)
        write_out()

    # ---------------- k >= 1 : one Laplacian power + fused-output term ----------
    def lap_step(x_prev, x_next):
        @pl.when(j == 0)
        def _():
            lap_acc[...] = jnp.zeros_like(lap_acc)

        # bf16 operands into the MXU, f32 accumulation (elementwise stays f32).
        x_panel = x_prev[pl.ds(col0, tn), :].astype(jnp.bfloat16)
        lap_acc[...] += jnp.dot(ahat_ref[...], x_panel, preferred_element_type=f32)

        @pl.when(j == nj - 1)
        def _():
            x_new = x_prev[pl.ds(row0, tm), :] - lap_acc[...]
            x_next[pl.ds(row0, tm), :] = x_new
            out_acc[pl.ds(row0, tm), :] += jnp.dot(x_new, w3_k, preferred_element_type=f32)
            write_out()

    @pl.when((k > 0) & (k % 2 == 1))        # odd k: read x_a, write x_b
    def _():
        lap_step(x_a, x_b)

    @pl.when((k > 0) & (k % 2 == 0))        # even k >= 2: read x_b, write x_a
    def _():
        lap_step(x_b, x_a)


def _round_up(n, m=LANE):
    return ((n + m - 1) // m) * m


def _embed(x, shape):
    """Zero-pad x into a zeros array of `shape` (top-left corner)."""
    out = jnp.zeros(shape, x.dtype)
    return out.at[tuple(slice(0, s) for s in x.shape)].set(x)


def _pick_tile(n_p, cap):
    t = min(cap, n_p)
    while n_p % t:
        t -= LANE
    return t


def bwgnn_forward(feat, A, dinv, W1, b1, W2, b2, W3, b3, thetas,
                  *, tile_m=None, tile_n=None):
    N, in_feats = feat.shape
    H = W1.shape[1]
    num_filters = len(thetas)
    num_k = len(thetas[0])

    # Fold D^{-1/2} into the adjacency once (removes per-step VPU scaling).
    A_hat = (dinv * A) * dinv.reshape(1, N)

    # Fuse concat + linear3:  W3_eff[k] = sum_i thetas[i][k] * W3[i*H:(i+1)*H, :]
    thetas_arr = jnp.asarray(thetas, dtype=jnp.float32)          # (num_filters, num_k)
    W3_blocks = W3.reshape(num_filters, H, H)
    W3_eff = jnp.einsum('ik,ihj->khj', thetas_arr, W3_blocks)    # (num_k, H, H)

    # Pad every dim that lands on lanes/sublanes to a multiple of 128 (incl. N,
    # so A_hat is lane-dense).  Padded A_hat rows/cols are zero => exact.
    in_p = _round_up(in_feats)
    h_p = _round_up(H)
    n_p = _round_up(N)

    feat_p = _embed(feat, (n_p, in_p))
    ahat_p = _embed(A_hat, (n_p, n_p)).astype(jnp.bfloat16)      # bf16 MXU operand
    W1_p = _embed(W1, (in_p, h_p))
    W2_p = _embed(W2, (h_p, h_p))
    W3e_p = _embed(W3_eff, (num_k, h_p, h_p))
    b1_p = _embed(b1, (1, h_p))
    b2_p = _embed(b2, (1, h_p))
    b3_p = _embed(b3, (1, h_p))

    # Tile sizes (keep the row tile, shrink the reduction tile first if VMEM-pressed).
    tm = tile_m or _pick_tile(n_p, 256)
    tn = tile_n or _pick_tile(n_p, 512)
    grid = (num_k, n_p // tm, n_p // tn)

    in_specs = [
        pl.BlockSpec((tm, in_p), lambda k, i, j: (i, 0)),        # feat row panel
        pl.BlockSpec((tm, tn), lambda k, i, j: (i, j)),          # A_hat tile (bf16)
        pl.BlockSpec((in_p, h_p), lambda k, i, j: (0, 0)),       # W1
        pl.BlockSpec((1, h_p), lambda k, i, j: (0, 0)),          # b1
        pl.BlockSpec((h_p, h_p), lambda k, i, j: (0, 0)),        # W2
        pl.BlockSpec((1, h_p), lambda k, i, j: (0, 0)),          # b2
        pl.BlockSpec((1, h_p, h_p), lambda k, i, j: (k, 0, 0)),  # W3_eff[k]
        pl.BlockSpec((1, h_p), lambda k, i, j: (0, 0)),          # b3
    ]
    out_specs = pl.BlockSpec((tm, h_p), lambda k, i, j: (i, 0))
    scratch_shapes = [
        pltpu.VMEM((n_p, h_p), jnp.float32),                     # x_a (x_k, even k)
        pltpu.VMEM((n_p, h_p), jnp.float32),                     # x_b (x_k, odd k)
        pltpu.VMEM((n_p, h_p), jnp.float32),                     # out accumulator
        pltpu.VMEM((tm, h_p), jnp.float32),                      # Laplacian partial acc
    ]

    # Scoped-VMEM limit computed from actual buffers (+2x headroom), min 32 MiB.
    block_bytes = 2 * (tm * in_p * 4 + tm * tn * 2 + in_p * h_p * 4
                       + 2 * h_p * h_p * 4 + 3 * h_p * 4 + tm * h_p * 4)
    scratch_bytes = (3 * n_p + tm) * h_p * 4
    vmem_limit = int(min(100 * 2 ** 20, max(32 * 2 ** 20, 2 * (block_bytes + scratch_bytes))))

    flops = (2 * n_p * in_p * h_p + 2 * n_p * h_p * h_p              # MLP
             + (num_k - 1) * 2 * n_p * n_p * h_p                     # Laplacian matmuls
             + num_k * 2 * n_p * h_p * h_p)                          # fused output matmuls
    bytes_accessed = (num_k * n_p * n_p * 2                          # A_hat streamed per k (bf16)
                      + n_p * in_p * 4 + n_p * h_p * 4               # feat in, out
                      + (in_p * h_p + h_p * h_p + num_k * h_p * h_p + 3 * h_p) * 4)

    out_p = pl.pallas_call(
        bwgnn_kernel,
        out_shape=jax.ShapeDtypeStruct((n_p, h_p), jnp.float32),
        grid_spec=pltpu.PrefetchScalarGridSpec(
            num_scalar_prefetch=0,
            grid=grid,
            in_specs=in_specs,
            out_specs=out_specs,
            scratch_shapes=scratch_shapes,
        ),
        compiler_params=pltpu.CompilerParams(
            # All 'arbitrary': k is sequential and row tiles at step k consume every
            # row tile of step k-1 via VMEM scratch (see header TODO re v7x 2-TC).
            dimension_semantics=("arbitrary", "arbitrary", "arbitrary"),
            vmem_limit_bytes=vmem_limit,
        ),
        cost_estimate=pl.CostEstimate(
            flops=int(flops), transcendentals=0, bytes_accessed=int(bytes_accessed)),
    )(feat_p, ahat_p, W1_p, b1_p, W2_p, b2_p, W3e_p, b3_p)

    # Slice padded rows AND columns back off.
    return out_p[:N, :H]


def bwgnn_reference(feat, A, dinv, W1, b1, W2, b2, W3, b3, thetas,
                    ahat_dtype=jnp.float32):
    """Pure-JAX reference.  With ahat_dtype=bf16 it emulates the kernel's
    quantisation of the Laplacian matmul operands (for a tight structural check)."""
    h = jnp.maximum(feat @ W1 + b1, 0.0)
    h = jnp.maximum(h @ W2 + b2, 0.0)
    A_hat = ((dinv * A) * dinv.reshape(1, -1)).astype(ahat_dtype).astype(jnp.float32)
    hs = []
    for theta in thetas:
        x = h
        acc = theta[0] * x
        for k in range(1, len(theta)):
            x = x - A_hat @ x.astype(ahat_dtype).astype(jnp.float32)
            acc = acc + theta[k] * x
        hs.append(acc)
    h_final = jnp.concatenate(hs, axis=-1)
    return jnp.maximum(h_final @ W3 + b3, 0.0)


def _build_problem(key, N, in_feats, h_feats, d):
    thetas = calculate_theta2(d)
    num_conv = len(thetas)
    k_feat, k_adj, k1, k2, k3, kb1, kb2, kb3 = jax.random.split(key, 8)

    feat = jax.random.normal(k_feat, (N, in_feats), dtype=jnp.float32)

    # Random undirected graph (dense adjacency, no self loops).
    rnd = jax.random.uniform(k_adj, (N, N))
    A = (rnd + rnd.T > 1.2).astype(jnp.float32)
    A = A * (1.0 - jnp.eye(N, dtype=jnp.float32))
    in_deg = jnp.maximum(jnp.sum(A, axis=1), 1.0)
    dinv = (in_deg ** -0.5).reshape(N, 1).astype(jnp.float32)

    def lin_init(k, fan_in, fan_out):
        bound = 1.0 / math.sqrt(fan_in)
        return jax.random.uniform(k, (fan_in, fan_out), jnp.float32, -bound, bound)

    W1 = lin_init(k1, in_feats, h_feats)
    b1 = jax.random.uniform(kb1, (1, h_feats), jnp.float32,
                            -1.0 / math.sqrt(in_feats), 1.0 / math.sqrt(in_feats))
    W2 = lin_init(k2, h_feats, h_feats)
    b2 = jax.random.uniform(kb2, (1, h_feats), jnp.float32,
                            -1.0 / math.sqrt(h_feats), 1.0 / math.sqrt(h_feats))
    W3 = lin_init(k3, h_feats * num_conv, h_feats)
    b3 = jax.random.uniform(kb3, (1, h_feats), jnp.float32,
                            -1.0 / math.sqrt(h_feats * num_conv),
                            1.0 / math.sqrt(h_feats * num_conv))
    return thetas, feat, A, dinv, W1, b1, W2, b2, W3, b3


if __name__ == "__main__":
    # Two problem sizes: the small demo (single tile) and a multi-tile graph
    # that exercises the (k, row, col) grid, scratch ping-pong and A_hat streaming.
    # (Multiple graphs could additionally be batched along the row dim via a
    # block-diagonal A_hat to fill the MXU's M dimension.)
    for (N, IN_FEATS, H_FEATS, D) in [(16, 8, 32, 2), (300, 8, 32, 2)]:
        (thetas, feat, A, dinv, W1, b1, W2, b2, W3, b3) = _build_problem(
            jax.random.PRNGKey(0), N, IN_FEATS, H_FEATS, D)

        out = bwgnn_forward(feat, A, dinv, W1, b1, W2, b2, W3, b3, thetas)
        out = jax.block_until_ready(out)
        assert out.shape == (N, H_FEATS)

        # Tight check vs a reference that emulates the bf16 A_hat / bf16 x quantisation.
        ref_q = bwgnn_reference(feat, A, dinv, W1, b1, W2, b2, W3, b3, thetas,
                                ahat_dtype=jnp.bfloat16)
        assert jnp.allclose(out, ref_q, atol=5e-3, rtol=5e-3), \
            f"mismatch vs bf16-emulating reference at N={N}"

        # Looser check vs the exact f32 module semantics (bounds the bf16 error).
        ref_f = bwgnn_reference(feat, A, dinv, W1, b1, W2, b2, W3, b3, thetas,
                                ahat_dtype=jnp.float32)
        assert jnp.allclose(out, ref_f, atol=5e-2, rtol=5e-2), \
            f"mismatch vs float32 reference at N={N}"

    print("KERNEL_OK")
</pallas_src>

<mosaic_0001>
module attributes {stable_mosaic.version = 11 : i64} {
  func.func @bwgnn_kernel(%arg0: i32, %arg1: i32, %arg2: i32, %arg3: memref<128x128xf32, #tpu.memory_space<vmem>>, %arg4: memref<128x128xbf16, #tpu.memory_space<vmem>>, %arg5: memref<128x128xf32, #tpu.memory_space<vmem>>, %arg6: memref<1x128xf32, #tpu.memory_space<vmem>>, %arg7: memref<128x128xf32, #tpu.memory_space<vmem>>, %arg8: memref<1x128xf32, #tpu.memory_space<vmem>>, %arg9: memref<1x128x128xf32, #tpu.memory_space<vmem>>, %arg10: memref<1x128xf32, #tpu.memory_space<vmem>>, %arg11: memref<128x128xf32, #tpu.memory_space<vmem>>, %arg12: memref<128x128xf32, #tpu.memory_space<vmem>>, %arg13: memref<128x128xf32, #tpu.memory_space<vmem>>, %arg14: memref<128x128xf32, #tpu.memory_space<vmem>>, %arg15: memref<128x128xf32, #tpu.memory_space<vmem>>) attributes {dimension_semantics = [#tpu.dimension_semantics<arbitrary>, #tpu.dimension_semantics<arbitrary>, #tpu.dimension_semantics<arbitrary>], iteration_bounds = array<i64: 3, 1, 1>, scalar_prefetch = 0 : i64, scratch_operands = 4 : i64, tpu.core_type = #tpu.core_type<tc>, window_params = [{transform_indices = @transform_0, window_bounds = array<i64: 128, 128>}, {transform_indices = @transform_1, window_bounds = array<i64: 128, 128>}, {pipeline_mode = #tpu.pipeline_mode<synchronous>, transform_indices = @transform_2, window_bounds = array<i64: 128, 128>}, {pipeline_mode = #tpu.pipeline_mode<synchronous>, transform_indices = @transform_3, window_bounds = array<i64: 1, 128>}, {pipeline_mode = #tpu.pipeline_mode<synchronous>, transform_indices = @transform_4, window_bounds = array<i64: 128, 128>}, {pipeline_mode = #tpu.pipeline_mode<synchronous>, transform_indices = @transform_5, window_bounds = array<i64: 1, 128>}, {transform_indices = @transform_6, window_bounds = array<i64: 1, 128, 128>}, {pipeline_mode = #tpu.pipeline_mode<synchronous>, transform_indices = @transform_7, window_bounds = array<i64: 1, 128>}, {transform_indices = @transform_8, window_bounds = array<i64: 128, 128>}]} {
    %c128_i32 = arith.constant 128 : i32
    %0 = arith.muli %arg1, %c128_i32 : i32
    %1 = tpu.assume_multiple %0, 128 : i32
    %c128_i32_0 = arith.constant 128 : i32
    %2 = arith.muli %arg2, %c128_i32_0 : i32
    %3 = tpu.assume_multiple %2, 128 : i32
    %c0 = arith.constant 0 : index
    %c0_1 = arith.constant 0 : index
    %c0_2 = arith.constant 0 : index
    %4 = vector.load %arg9[%c0, %c0_1, %c0_2] : memref<1x128x128xf32, #tpu.memory_space<vmem>>, vector<1x128x128xf32>
    %5 = vector.shape_cast %4 : vector<1x128x128xf32> to vector<128x128xf32>
    %c0_i32 = arith.constant 0 : i32
    %6 = arith.cmpi eq, %arg0, %c0_i32 : i32
    %c0_i32_3 = arith.constant 0 : i32
    %7 = arith.cmpi eq, %arg2, %c0_i32_3 : i32
    %8 = arith.andi %6, %7 : i1
    %9 = arith.extui %8 : i1 to i32
    %c0_i32_4 = arith.constant 0 : i32
    %10 = arith.cmpi ne, %9, %c0_i32_4 : i32
    scf.if %10 {
      %c0_21 = arith.constant 0 : index
      %c0_22 = arith.constant 0 : index
      %41 = vector.load %arg3[%c0_21, %c0_22] : memref<128x128xf32, #tpu.memory_space<vmem>>, vector<128x128xf32>
      %c0_23 = arith.constant 0 : index
      %c0_24 = arith.constant 0 : index
      %42 = vector.load %arg5[%c0_23, %c0_24] : memref<128x128xf32, #tpu.memory_space<vmem>>, vector<128x128xf32>
      %cst = arith.constant dense<0.000000e+00> : vector<128x128xf32>
      %43 = tpu.matmul %41, %42, %cst {dimension_numbers = #tpu.dot_dimension_numbers<[1], [0], [0], [1], [0, 0, 1, 1], [], []>} : vector<128x128xf32>, vector<128x128xf32>, vector<128x128xf32> -> vector<128x128xf32>
      %c0_25 = arith.constant 0 : index
      %c0_26 = arith.constant 0 : index
      %44 = vector.load %arg6[%c0_25, %c0_26] : memref<1x128xf32, #tpu.memory_space<vmem>>, vector<1x128xf32>
      %45 = vector.broadcast %44 : vector<1x128xf32> to vector<128x128xf32>
      %46 = arith.addf %43, %45 : vector<128x128xf32>
      %cst_27 = arith.constant 0.000000e+00 : f32
      %47 = vector.broadcast %cst_27 : f32 to vector<128x128xf32>
      %48 = arith.maximumf %46, %47 : vector<128x128xf32>
      %c0_28 = arith.constant 0 : index
      %c0_29 = arith.constant 0 : index
      %49 = vector.load %arg7[%c0_28, %c0_29] : memref<128x128xf32, #tpu.memory_space<vmem>>, vector<128x128xf32>
      %cst_30 = arith.constant dense<0.000000e+00> : vector<128x128xf32>
      %50 = tpu.matmul %48, %49, %cst_30 {dimension_numbers = #tpu.dot_dimension_numbers<[1], [0], [0], [1], [0, 0, 1, 1], [], []>} : vector<128x128xf32>, vector<128x128xf32>, vector<128x128xf32> -> vector<128x128xf32>
      %c0_31 = arith.constant 0 : index
      %c0_32 = arith.constant 0 : index
      %51 = vector.load %arg8[%c0_31, %c0_32] : memref<1x128xf32, #tpu.memory_space<vmem>>, vector<1x128xf32>
      %52 = vector.broadcast %51 : vector<1x128xf32> to vector<128x128xf32>
      %53 = arith.addf %50, %52 : vector<128x128xf32>
      %cst_33 = arith.constant 0.000000e+00 : f32
      %54 = vector.broadcast %cst_33 : f32 to vector<128x128xf32>
      %55 = arith.maximumf %53, %54 : vector<128x128xf32>
      %56 = arith.index_cast %1 : i32 to index
      %c0_34 = arith.constant 0 : index
      %57 = vector.load %arg12[%56, %c0_34] : memref<128x128xf32, #tpu.memory_space<vmem>>, vector<128x128xf32>
      tpu.vector_store %arg12[%56, %c0_34], %55 {strides = array<i32>} : memref<128x128xf32, #tpu.memory_space<vmem>>, vector<128x128xf32>,
      %cst_35 = arith.constant dense<0.000000e+00> : vector<128x128xf32>
      %58 = tpu.matmul %55, %5, %cst_35 {dimension_numbers = #tpu.dot_dimension_numbers<[1], [0], [0], [1], [0, 0, 1, 1], [], []>} : vector<128x128xf32>, vector<128x128xf32>, vector<128x128xf32> -> vector<128x128xf32>
      %59 = arith.index_cast %1 : i32 to index
      %c0_36 = arith.constant 0 : index
      %60 = vector.load %arg14[%59, %c0_36] : memref<128x128xf32, #tpu.memory_space<vmem>>, vector<128x128xf32>
      tpu.vector_store %arg14[%59, %c0_36], %58 {strides = array<i32>} : memref<128x128xf32, #tpu.memory_space<vmem>>, vector<128x128xf32>,
      %61 = arith.index_cast %1 : i32 to index
      %c0_37 = arith.constant 0 : index
      %62 = vector.load %arg14[%61, %c0_37] : memref<128x128xf32, #tpu.memory_space<vmem>>, vector<128x128xf32>
      %c0_38 = arith.constant 0 : index
      %c0_39 = arith.constant 0 : index
      %63 = vector.load %arg10[%c0_38, %c0_39] : memref<1x128xf32, #tpu.memory_space<vmem>>, vector<1x128xf32>
      %64 = vector.broadcast %63 : vector<1x128xf32> to vector<128x128xf32>
      %65 = arith.addf %62, %64 : vector<128x128xf32>
      %cst_40 = arith.constant 0.000000e+00 : f32
      %66 = vector.broadcast %cst_40 : f32 to vector<128x128xf32>
      %67 = arith.maximumf %65, %66 : vector<128x128xf32>
      %c0_41 = arith.constant 0 : index
      %c0_42 = arith.constant 0 : index
      %68 = vector.load %arg11[%c0_41, %c0_42] : memref<128x128xf32, #tpu.memory_space<vmem>>, vector<128x128xf32>
      tpu.vector_store %arg11[%c0_41, %c0_42], %67 {strides = array<i32>} : memref<128x128xf32, #tpu.memory_space<vmem>>, vector<128x128xf32>,
    } else {
    }
    %c0_i32_5 = arith.constant 0 : i32
    %11 = arith.cmpi sgt, %arg0, %c0_i32_5 : i32
    %c2_i32 = arith.constant 2 : i32
    %c0_i32_6 = arith.constant 0 : i32
    %12 = arith.cmpi eq, %c2_i32, %c0_i32_6 : i32
    %c1_i32 = arith.constant 1 : i32
    %13 = arith.select %12, %c1_i32, %c2_i32 : i32
    %14 = arith.remsi %arg0, %13 : i32
    %c0_i32_7 = arith.constant 0 : i32
    %15 = arith.cmpi ne, %14, %c0_i32_7 : i32
    %c0_i32_8 = arith.constant 0 : i32
    %16 = arith.cmpi slt, %14, %c0_i32_8 : i32
    %c0_i32_9 = arith.constant 0 : i32
    %17 = arith.cmpi slt, %13, %c0_i32_9 : i32
    %18 = arith.xori %16, %17 : i1
    %19 = arith.andi %18, %15 : i1
    %20 = arith.addi %14, %13 : i32
    %21 = arith.select %19, %20, %14 : i32
    %c1_i32_10 = arith.constant 1 : i32
    %22 = arith.cmpi eq, %21, %c1_i32_10 : i32
    %23 = arith.andi %11, %22 : i1
    %24 = arith.extui %23 : i1 to i32
    %c0_i32_11 = arith.constant 0 : i32
    %25 = arith.cmpi ne, %24, %c0_i32_11 : i32
    scf.if %25 {
      %c0_i32_21 = arith.constant 0 : i32
      %41 = arith.cmpi eq, %arg2, %c0_i32_21 : i32
      %42 = arith.extui %41 : i1 to i32
      %c0_i32_22 = arith.constant 0 : i32
      %43 = arith.cmpi ne, %42, %c0_i32_22 : i32
      scf.if %43 {
        %cst_32 = arith.constant 0.000000e+00 : f32
        %55 = vector.broadcast %cst_32 : f32 to vector<128x128xf32>
        %c0_33 = arith.constant 0 : index
        %c0_34 = arith.constant 0 : index
        %56 = vector.load %arg15[%c0_33, %c0_34] : memref<128x128xf32, #tpu.memory_space<vmem>>, vector<128x128xf32>
        tpu.vector_store %arg15[%c0_33, %c0_34], %55 {strides = array<i32>} : memref<128x128xf32, #tpu.memory_space<vmem>>, vector<128x128xf32>,
      } else {
      }
      %44 = arith.index_cast %3 : i32 to index
      %c0_23 = arith.constant 0 : index
      %45 = vector.load %arg12[%44, %c0_23] : memref<128x128xf32, #tpu.memory_space<vmem>>, vector<128x128xf32>
      %46 = arith.truncf %45 : vector<128x128xf32> to vector<128x128xbf16>
      %c0_24 = arith.constant 0 : index
      %c0_25 = arith.constant 0 : index
      %47 = vector.load %arg15[%c0_24, %c0_25] : memref<128x128xf32, #tpu.memory_space<vmem>>, vector<128x128xf32>
      %c0_26 = arith.constant 0 : index
      %c0_27 = arith.constant 0 : index
      %48 = vector.load %arg4[%c0_26, %c0_27] : memref<128x128xbf16, #tpu.memory_space<vmem>>, vector<128x128xbf16>
      %cst = arith.constant dense<0.000000e+00> : vector<128x128xf32>
      %49 = tpu.matmul %48, %46, %cst {dimension_numbers = #tpu.dot_dimension_numbers<[1], [0], [0], [1], [0, 0, 1, 1], [], []>} : vector<128x128xbf16>, vector<128x128xbf16>, vector<128x128xf32> -> vector<128x128xf32>
      %50 = arith.addf %47, %49 : vector<128x128xf32>
      %c0_28 = arith.constant 0 : index
      %c0_29 = arith.constant 0 : index
      %51 = vector.load %arg15[%c0_28, %c0_29] : memref<128x128xf32, #tpu.memory_space<vmem>>, vector<128x128xf32>
      tpu.vector_store %arg15[%c0_28, %c0_29], %50 {strides = array<i32>} : memref<128x128xf32, #tpu.memory_space<vmem>>, vector<128x128xf32>,
      %c0_i32_30 = arith.constant 0 : i32
      %52 = arith.cmpi eq, %arg2, %c0_i32_30 : i32
      %53 = arith.extui %52 : i1 to i32
      %c0_i32_31 = arith.constant 0 : i32
      %54 = arith.cmpi ne, %53, %c0_i32_31 : i32
      scf.if %54 {
        %55 = arith.index_cast %1 : i32 to index
        %c0_32 = arith.constant 0 : index
        %56 = vector.load %arg12[%55, %c0_32] : memref<128x128xf32, #tpu.memory_space<vmem>>, vector<128x128xf32>
        %c0_33 = arith.constant 0 : index
        %c0_34 = arith.constant 0 : index
        %57 = vector.load %arg15[%c0_33, %c0_34] : memref<128x128xf32, #tpu.memory_space<vmem>>, vector<128x128xf32>
        %58 = arith.subf %56, %57 : vector<128x128xf32>
        %59 = arith.index_cast %1 : i32 to index
        %c0_35 = arith.constant 0 : index
        %60 = vector.load %arg13[%59, %c0_35] : memref<128x128xf32, #tpu.memory_space<vmem>>, vector<128x128xf32>
        tpu.vector_store %arg13[%59, %c0_35], %58 {strides = array<i32>} : memref<128x128xf32, #tpu.memory_space<vmem>>, vector<128x128xf32>,
        %61 = arith.index_cast %1 : i32 to index
        %c0_36 = arith.constant 0 : index
        %62 = vector.load %arg14[%61, %c0_36] : memref<128x128xf32, #tpu.memory_space<vmem>>, vector<128x128xf32>
        %cst_37 = arith.constant dense<0.000000e+00> : vector<128x128xf32>
        %63 = tpu.matmul %58, %5, %cst_37 {dimension_numbers = #tpu.dot_dimension_numbers<[1], [0], [0], [1], [0, 0, 1, 1], [], []>} : vector<128x128xf32>, vector<128x128xf32>, vector<128x128xf32> -> vector<128x128xf32>
        %64 = arith.addf %62, %63 : vector<128x128xf32>
        %65 = arith.index_cast %1 : i32 to index
        %c0_38 = arith.constant 0 : index
        %66 = vector.load %arg14[%65, %c0_38] : memref<128x128xf32, #tpu.memory_space<vmem>>, vector<128x128xf32>
        tpu.vector_store %arg14[%65, %c0_38], %64 {strides = array<i32>} : memref<128x128xf32, #tpu.memory_space<vmem>>, vector<128x128xf32>,
        %67 = arith.index_cast %1 : i32 to index
        %c0_39 = arith.constant 0 : index
        %68 = vector.load %arg14[%67, %c0_39] : memref<128x128xf32, #tpu.memory_space<vmem>>, vector<128x128xf32>
        %c0_40 = arith.constant 0 : index
        %c0_41 = arith.constant 0 : index
        %69 = vector.load %arg10[%c0_40, %c0_41] : memref<1x128xf32, #tpu.memory_space<vmem>>, vector<1x128xf32>
        %70 = vector.broadcast %69 : vector<1x128xf32> to vector<128x128xf32>
        %71 = arith.addf %68, %70 : vector<128x128xf32>
        %cst_42 = arith.constant 0.000000e+00 : f32
        %72 = vector.broadcast %cst_42 : f32 to vector<128x128xf32>
        %73 = arith.maximumf %71, %72 : vector<128x128xf32>
        %c0_43 = arith.constant 0 : index
        %c0_44 = arith.constant 0 : index
        %74 = vector.load %arg11[%c0_43, %c0_44] : memref<128x128xf32, #tpu.memory_space<vmem>>, vector<128x128xf32>
        tpu.vector_store %arg11[%c0_43, %c0_44], %73 {strides = array<i32>} : memref<128x128xf32, #tpu.memory_space<vmem>>, vector<128x128xf32>,
      } else {
      }
    } else {
    }
    %c0_i32_12 = arith.constant 0 : i32
    %26 = arith.cmpi sgt, %arg0, %c0_i32_12 : i32
    %c2_i32_13 = arith.constant 2 : i32
    %c0_i32_14 = arith.constant 0 : i32
    %27 = arith.cmpi eq, %c2_i32_13, %c0_i32_14 : i32
    %c1_i32_15 = arith.constant 1 : i32
    %28 = arith.select %27, %c1_i32_15, %c2_i32_13 : i32
    %29 = arith.remsi %arg0, %28 : i32
    %c0_i32_16 = arith.constant 0 : i32
    %30 = arith.cmpi ne, %29, %c0_i32_16 : i32
    %c0_i32_17 = arith.constant 0 : i32
    %31 = arith.cmpi slt, %29, %c0_i32_17 : i32
    %c0_i32_18 = arith.constant 0 : i32
    %32 = arith.cmpi slt, %28, %c0_i32_18 : i32
    %33 = arith.xori %31, %32 : i1
    %34 = arith.andi %33, %30 : i1
    %35 = arith.addi %29, %28 : i32
    %36 = arith.select %34, %35, %29 : i32
    %c0_i32_19 = arith.constant 0 : i32
    %37 = arith.cmpi eq, %36, %c0_i32_19 : i32
    %38 = arith.andi %26, %37 : i1
    %39 = arith.extui %38 : i1 to i32
    %c0_i32_20 = arith.constant 0 : i32
    %40 = arith.cmpi ne, %39, %c0_i32_20 : i32
    scf.if %40 {
      %c0_i32_21 = arith.constant 0 : i32
      %41 = arith.cmpi eq, %arg2, %c0_i32_21 : i32
      %42 = arith.extui %41 : i1 to i32
      %c0_i32_22 = arith.constant 0 : i32
      %43 = arith.cmpi ne, %42, %c0_i32_22 : i32
      scf.if %43 {
        %cst_32 = arith.constant 0.000000e+00 : f32
        %55 = vector.broadcast %cst_32 : f32 to vector<128x128xf32>
        %c0_33 = arith.constant 0 : index
        %c0_34 = arith.constant 0 : index
        %56 = vector.load %arg15[%c0_33, %c0_34] : memref<128x128xf32, #tpu.memory_space<vmem>>, vector<128x128xf32>
        tpu.vector_store %arg15[%c0_33, %c0_34], %55 {strides = array<i32>} : memref<128x128xf32, #tpu.memory_space<vmem>>, vector<128x128xf32>,
      } else {
      }
      %44 = arith.index_cast %3 : i32 to index
      %c0_23 = arith.constant 0 : index
      %45 = vector.load %arg13[%44, %c0_23] : memref<128x128xf32, #tpu.memory_space<vmem>>, vector<128x128xf32>
      %46 = arith.truncf %45 : vector<128x128xf32> to vector<128x128xbf16>
      %c0_24 = arith.constant 0 : index
      %c0_25 = arith.constant 0 : index
      %47 = vector.load %arg15[%c0_24, %c0_25] : memref<128x128xf32, #tpu.memory_space<vmem>>, vector<128x128xf32>
      %c0_26 = arith.constant 0 : index
      %c0_27 = arith.constant 0 : index
      %48 = vector.load %arg4[%c0_26, %c0_27] : memref<128x128xbf16, #tpu.memory_space<vmem>>, vector<128x128xbf16>
      %cst = arith.constant dense<0.000000e+00> : vector<128x128xf32>
      %49 = tpu.matmul %48, %46, %cst {dimension_numbers = #tpu.dot_dimension_numbers<[1], [0], [0], [1], [0, 0, 1, 1], [], []>} : vector<128x128xbf16>, vector<128x128xbf16>, vector<128x128xf32> -> vector<128x128xf32>
      %50 = arith.addf %47, %49 : vector<128x128xf32>
      %c0_28 = arith.constant 0 : index
      %c0_29 = arith.constant 0 : index
      %51 = vector.load %arg15[%c0_28, %c0_29] : memref<128x128xf32, #tpu.memory_space<vmem>>, vector<128x128xf32>
      tpu.vector_store %arg15[%c0_28, %c0_29], %50 {strides = array<i32>} : memref<128x128xf32, #tpu.memory_space<vmem>>, vector<128x128xf32>,
      %c0_i32_30 = arith.constant 0 : i32
      %52 = arith.cmpi eq, %arg2, %c0_i32_30 : i32
      %53 = arith.extui %52 : i1 to i32
      %c0_i32_31 = arith.constant 0 : i32
      %54 = arith.cmpi ne, %53, %c0_i32_31 : i32
      scf.if %54 {
        %55 = arith.index_cast %1 : i32 to index
        %c0_32 = arith.constant 0 : index
        %56 = vector.load %arg13[%55, %c0_32] : memref<128x128xf32, #tpu.memory_space<vmem>>, vector<128x128xf32>
        %c0_33 = arith.constant 0 : index
        %c0_34 = arith.constant 0 : index
        %57 = vector.load %arg15[%c0_33, %c0_34] : memref<128x128xf32, #tpu.memory_space<vmem>>, vector<128x128xf32>
        %58 = arith.subf %56, %57 : vector<128x128xf32>
        %59 = arith.index_cast %1 : i32 to index
        %c0_35 = arith.constant 0 : index
        %60 = vector.load %arg12[%59, %c0_35] : memref<128x128xf32, #tpu.memory_space<vmem>>, vector<128x128xf32>
        tpu.vector_store %arg12[%59, %c0_35], %58 {strides = array<i32>} : memref<128x128xf32, #tpu.memory_space<vmem>>, vector<128x128xf32>,
        %61 = arith.index_cast %1 : i32 to index
        %c0_36 = arith.constant 0 : index
        %62 = vector.load %arg14[%61, %c0_36] : memref<128x128xf32, #tpu.memory_space<vmem>>, vector<128x128xf32>
        %cst_37 = arith.constant dense<0.000000e+00> : vector<128x128xf32>
        %63 = tpu.matmul %58, %5, %cst_37 {dimension_numbers = #tpu.dot_dimension_numbers<[1], [0], [0], [1], [0, 0, 1, 1], [], []>} : vector<128x128xf32>, vector<128x128xf32>, vector<128x128xf32> -> vector<128x128xf32>
        %64 = arith.addf %62, %63 : vector<128x128xf32>
        %65 = arith.index_cast %1 : i32 to index
        %c0_38 = arith.constant 0 : index
        %66 = vector.load %arg14[%65, %c0_38] : memref<128x128xf32, #tpu.memory_space<vmem>>, vector<128x128xf32>
        tpu.vector_store %arg14[%65, %c0_38], %64 {strides = array<i32>} : memref<128x128xf32, #tpu.memory_space<vmem>>, vector<128x128xf32>,
        %67 = arith.index_cast %1 : i32 to index
        %c0_39 = arith.constant 0 : index
        %68 = vector.load %arg14[%67, %c0_39] : memref<128x128xf32, #tpu.memory_space<vmem>>, vector<128x128xf32>
        %c0_40 = arith.constant 0 : index
        %c0_41 = arith.constant 0 : index
        %69 = vector.load %arg10[%c0_40, %c0_41] : memref<1x128xf32, #tpu.memory_space<vmem>>, vector<1x128xf32>
        %70 = vector.broadcast %69 : vector<1x128xf32> to vector<128x128xf32>
        %71 = arith.addf %68, %70 : vector<128x128xf32>
        %cst_42 = arith.constant 0.000000e+00 : f32
        %72 = vector.broadcast %cst_42 : f32 to vector<128x128xf32>
        %73 = arith.maximumf %71, %72 : vector<128x128xf32>
        %c0_43 = arith.constant 0 : index
        %c0_44 = arith.constant 0 : index
        %74 = vector.load %arg11[%c0_43, %c0_44] : memref<128x128xf32, #tpu.memory_space<vmem>>, vector<128x128xf32>
        tpu.vector_store %arg11[%c0_43, %c0_44], %73 {strides = array<i32>} : memref<128x128xf32, #tpu.memory_space<vmem>>, vector<128x128xf32>,
      } else {
      }
    } else {
    }
    return
  }
  func.func @transform_0(%arg0: i32, %arg1: i32, %arg2: i32) -> (i32, i32) {
    %c0_i32 = arith.constant 0 : i32
    %c0_i32_0 = arith.constant 0 : i32
    return %arg1, %c0_i32 : i32, i32
  }
  func.func @transform_1(%arg0: i32, %arg1: i32, %arg2: i32) -> (i32, i32) {
    %c0_i32 = arith.constant 0 : i32
    return %arg1, %arg2 : i32, i32
  }
  func.func @transform_2(%arg0: i32, %arg1: i32, %arg2: i32) -> (i32, i32) {
    %c0_i32 = arith.constant 0 : i32
    %c0_i32_0 = arith.constant 0 : i32
    %c0_i32_1 = arith.constant 0 : i32
    return %c0_i32, %c0_i32_0 : i32, i32
  }
  func.func @transform_3(%arg0: i32, %arg1: i32, %arg2: i32) -> (i32, i32) {
    %c0_i32 = arith.constant 0 : i32
    %c0_i32_0 = arith.constant 0 : i32
    %c0_i32_1 = arith.constant 0 : i32
    return %c0_i32, %c0_i32_0 : i32, i32
  }
  func.func @transform_4(%arg0: i32, %arg1: i32, %arg2: i32) -> (i32, i32) {
    %c0_i32 = arith.constant 0 : i32
    %c0_i32_0 = arith.constant 0 : i32
    %c0_i32_1 = arith.constant 0 : i32
    return %c0_i32, %c0_i32_0 : i32, i32
  }
  func.func @transform_5(%arg0: i32, %arg1: i32, %arg2: i32) -> (i32, i32) {
    %c0_i32 = arith.constant 0 : i32
    %c0_i32_0 = arith.constant 0 : i32
    %c0_i32_1 = arith.constant 0 : i32
    return %c0_i32, %c0_i32_0 : i32, i32
  }
  func.func @transform_6(%arg0: i32, %arg1: i32, %arg2: i32) -> (i32, i32, i32) {
    %c0_i32 = arith.constant 0 : i32
    %c0_i32_0 = arith.constant 0 : i32
    %c0_i32_1 = arith.constant 0 : i32
    return %arg0, %c0_i32, %c0_i32_0 : i32, i32, i32
  }
  func.func @transform_7(%arg0: i32, %arg1: i32, %arg2: i32) -> (i32, i32) {
    %c0_i32 = arith.constant 0 : i32
    %c0_i32_0 = arith.constant 0 : i32
    %c0_i32_1 = arith.constant 0 : i32
    return %c0_i32, %c0_i32_0 : i32, i32
  }
  func.func @transform_8(%arg0: i32, %arg1: i32, %arg2: i32) -> (i32, i32) {
    %c0_i32 = arith.constant 0 : i32
    %c0_i32_0 = arith.constant 0 : i32
    return %arg1, %c0_i32 : i32, i32
  }
}

</mosaic_0001>

<llo_original>
// kernel: tpu_custom_call.1
$region0: #{tpu_custom_call.1}
  #allocation0 [shape = 'u32[]', space=smem, size = 0x4, offset = 0x4, fixed_abs, tag = 'smem constant byte address 0x4 - core index']
  #allocation1 [shape = 'u32[144,128]{1,0:T(1,128)}', space=vmem, size = 0x12000, scoped, tag = 'internal scratch']
  #allocation2 [shape = 'f32[128,128]{1,0:T(8,128)}', space=vmem, size = 0x10000, scoped, tag = 'scratch operand']
  #allocation3 [shape = 'f32[128,128]{1,0:T(8,128)}', space=vmem, size = 0x10000, scoped, tag = 'scratch operand']
  #allocation4 [shape = 'f32[128,128]{1,0:T(8,128)}', space=vmem, size = 0x10000, scoped, tag = 'scratch operand']
  #allocation5 [shape = 'f32[128,128]{1,0:T(8,128)}', space=vmem, size = 0x10000, scoped, tag = 'scratch operand']
  %s0 = inlined_call_operand.hbm [shape: f32[128,128], index: 0, kind: input, shape index: {}]
  %s1 = inlined_call_operand.hbm [shape: bf16[128,128], index: 1, kind: input, shape index: {}]
  %s2 = inlined_call_operand.hbm [shape: f32[128,128], index: 2, kind: input, shape index: {}]
  %s3 = inlined_call_operand.vmem [shape: f32[1,128], index: 3, kind: input, shape index: {}]
  %s4 = inlined_call_operand.hbm [shape: f32[128,128], index: 4, kind: input, shape index: {}]
  %s5 = inlined_call_operand.vmem [shape: f32[1,128], index: 5, kind: input, shape index: {}]
  %s6 = inlined_call_operand.hbm [shape: f32[3,128,128], index: 6, kind: input, shape index: {}]
  %s7 = inlined_call_operand.vmem [shape: f32[1,128], index: 7, kind: input, shape index: {}]
  %s8 = inlined_call_operand.hbm [shape: f32[128,128], index: 8, kind: output, shape index: {}]
  %s9 = sld [smem:[#allocation0]]
  $region113: #{tpu_custom_call.1} parent=0
    _
  %s11 = ssub.s32 1, %s9
  %s12 = scalar_select 0, %s11, %s9
  $region1: #{tpu_custom_call.1} parent=0
    #allocation6 [shape = 'u8[65536]{0}', space=vmem, size = 0x10000, scoped, tag = 'input window, operand 0, single buffered']
    #allocation7 [shape = 's32[2]{0}', space=sflag, size = 0x8, scoped, tag = 'scoped memory for tpu_custom_call.1']
    #allocation8 [shape = 's32[2]{0}', space=sflag, size = 0x8, scoped, tag = 'scoped memory for tpu_custom_call.1']
    #allocation9 [shape = 'u8[32768]{0}', space=vmem, size = 0x8000, scoped, tag = 'input window, operand 1, single buffered']
    #allocation10 [shape = 's32[1]{0}', space=sflag, size = 0x4, scoped, tag = 'scoped memory for tpu_custom_call.1']
    #allocation11 [shape = 'u8[65536]{0}', space=vmem, size = 0x10000, scoped, tag = 'input window, operand 2, single buffered']
    #allocation12 [shape = 'u8[65536]{0}', space=vmem, size = 0x10000, scoped, tag = 'input window, operand 4, single buffered']
    #allocation13 [shape = 's32[1]{0}', space=sflag, size = 0x4, scoped, tag = 'scoped memory for tpu_custom_call.1']
    #allocation14 [shape = 'u8[131072]{0}', space=vmem, size = 0x20000, scoped, tag = 'input window, operand 6']
    #allocation15 [shape = 'u8[65536]{0}', space=vmem, size = 0x10000, scoped, tag = 'output window, operand 0, single buffered']
    %13 = vsyncpa [#allocation7], 0
    %14 = vsyncpa [#allocation10], 0
    %15 = vsyncpa [#allocation13], 0
    %16 = vsyncpa [#allocation8], 0
    loop: start=0, step=1, limit=5
    $region2: #{tpu_custom_call.1} parent=1 // loop_pre_header
      _
    $region3: #{tpu_custom_call.1} parent=1 // loop_header
      %s18 = sphi 0, %s22
      %p19 = scmp.ge.s32.totalorder %s18, 5
      %s25 = sphi 0, %s44
      %s26 = sphi 0, %s40
      %s27 = sphi 0, %s36
      %s28 = sphi 0, %s25
      %s29 = sphi 0, %s26
      %s30 = sphi 0, %s27
      %s31 = sphi 0, %s28
      %s32 = sphi 0, %s29
      %s33 = sphi 0, %s30
      %s47 = sphi 0, %s49
      %s50 = sphi 0, %s47
      %s51 = sphi 0, %s50
      %s67 = sphi 0, %s51
      %s75 = sphi 0, %s77
      %s78 = sphi 0, %s75
      %s79 = sphi 0, %s78
      %s95 = sphi 0, %s79
      %s99 = sphi 0, %s99
      %s101 = sphi 0, %s99
      %s102 = sphi 0, %s101
      %s116 = sphi 0, %s102
      %s120 = sphi 0, %s120
      %s122 = sphi 0, %s120
      %s123 = sphi 0, %s122
      %s137 = sphi 0, %s123
      %s141 = sphi 0, %s141
      %s143 = sphi 0, %s141
      %s144 = sphi 0, %s143
      %s158 = sphi 0, %s144
      %s162 = sphi 0, %s162
      %s164 = sphi 0, %s162
      %s165 = sphi 0, %s164
      %s179 = sphi 0, %s165
      %s185 = sphi 0, %s187
      %s188 = sphi 0, %s185
      %s189 = sphi 0, %s188
      %s205 = sphi 0, %s189
      %s209 = sphi 0, %s209
      %s211 = sphi 0, %s209
      %s212 = sphi 0, %s211
      %s226 = sphi 0, %s212
      %s232 = sphi 0, %s234
      %s235 = sphi 0, %s232
      %s236 = sphi 0, %s235
      %s252 = sphi 0, %s236
    $region4: #{tpu_custom_call.1} parent=1 // loop_header_branch
      %21 = sbr.rel (%p19) target = $region8
    $region5: #{tpu_custom_call.1} parent=1 // loop_body
      %s23 = ssub.s32 %s18, 1
      %s24 = ssub.s32 %s18, 2
      %s34 = sadd.s32 1, %s27
      %p35 = scmp.ge.s32.totalorder %s34, 1
      %s36 = scalar_select %p35, 0, %s34
      %s37 = sadd.s32 1, %s26
      %s38 = scalar_select %p35, %s37, %s26
      %p39 = scmp.ge.s32.totalorder %s38, 1
      %s40 = scalar_select %p39, 0, %s38
      %s41 = sadd.s32 1, %s25
      %s42 = scalar_select %p39, %s41, %s25
      %p43 = scmp.ge.s32.totalorder %s42, 3
      %s44 = scalar_select %p43, 0, %s42
      %s45 = ssub.s32 %s26, %s40
      %p46 = scmp.eq.s32.totalorder %s45, 0
      %s48 = sadd.s32 %s47, 1
      %s49 = scalar_select %p46, %s47, %s48
      %p52 = pneg %p46
      %p53 = scmp.eq.s32.totalorder %s18, 2
      %p54 = por %p52, %p53
      %p55 = scmp.ne.s32.totalorder %s47, %s50
      %p56 = scmp.eq.s32.totalorder %s18, 0
      %p57 = por %p55, %p56
      %p58 = scmp.ne.s32.totalorder %s47, %s50
      %p59 = scmp.eq.s32.totalorder %s23, 2
      %p60 = por %p58, %p59
      %p61 = scmp.ne.s32.totalorder %s50, %s51
      %p62 = scmp.eq.s32.totalorder %s23, 0
      %p63 = por %p61, %p62
      %p64 = scmp.ne.s32.totalorder %s50, %s51
      %p65 = scmp.eq.s32.totalorder %s24, 2
      %p66 = por %p64, %p65
      %p68 = scmp.ne.s32.totalorder %s51, %s67
      %p69 = scmp.eq.s32.totalorder %s24, 0
      %p70 = por %p68, %p69
      %s71 = ssub.s32 %s26, %s40
      %s72 = ssub.s32 %s27, %s36
      %s73 = sor.u32 %s71, %s72
      %p74 = scmp.eq.s32.totalorder %s73, 0
      %s76 = sadd.s32 %s75, 1
      %s77 = scalar_select %p74, %s75, %s76
      %p80 = pneg %p74
      %p81 = scmp.eq.s32.totalorder %s18, 2
      %p82 = por %p80, %p81
      %p83 = scmp.ne.s32.totalorder %s75, %s78
      %p84 = scmp.eq.s32.totalorder %s18, 0
      %p85 = por %p83, %p84
      %p86 = scmp.ne.s32.totalorder %s75, %s78
      %p87 = scmp.eq.s32.totalorder %s23, 2
      %p88 = por %p86, %p87
      %p89 = scmp.ne.s32.totalorder %s78, %s79
      %p90 = scmp.eq.s32.totalorder %s23, 0
      %p91 = por %p89, %p90
      %p92 = scmp.ne.s32.totalorder %s78, %s79
      %p93 = scmp.eq.s32.totalorder %s24, 2
      %p94 = por %p92, %p93
      %p96 = scmp.ne.s32.totalorder %s79, %s95
      %p97 = scmp.eq.s32.totalorder %s24, 0
      %p98 = por %p96, %p97
      %s100 = sadd.s32 %s99, 1
      %p103 = scmp.eq.s32.totalorder %s18, 2
      %p104 = scmp.ne.s32.totalorder %s99, %s101
      %p105 = scmp.eq.s32.totalorder %s18, 0
      %p106 = por %p104, %p105
      %p107 = scmp.ne.s32.totalorder %s99, %s101
      %p108 = scmp.eq.s32.totalorder %s23, 2
      %p109 = por %p107, %p108
      %p110 = scmp.ne.s32.totalorder %s101, %s102
      %p111 = scmp.eq.s32.totalorder %s23, 0
      %p112 = por %p110, %p111
      %p113 = scmp.ne.s32.totalorder %s101, %s102
      %p114 = scmp.eq.s32.totalorder %s24, 2
      %p115 = por %p113, %p114
      %p117 = scmp.ne.s32.totalorder %s102, %s116
      %p118 = scmp.eq.s32.totalorder %s24, 0
      %p119 = por %p117, %p118
      %s121 = sadd.s32 %s120, 1
      %p124 = scmp.eq.s32.totalorder %s18, 2
      %p125 = scmp.ne.s32.totalorder %s120, %s122
      %p126 = scmp.eq.s32.totalorder %s18, 0
      %p127 = por %p125, %p126
      %p128 = scmp.ne.s32.totalorder %s120, %s122
      %p129 = scmp.eq.s32.totalorder %s23, 2
      %p130 = por %p128, %p129
      %p131 = scmp.ne.s32.totalorder %s122, %s123
      %p132 = scmp.eq.s32.totalorder %s23, 0
      %p133 = por %p131, %p132
      %p134 = scmp.ne.s32.totalorder %s122, %s123
      %p135 = scmp.eq.s32.totalorder %s24, 2
      %p136 = por %p134, %p135
      %p138 = scmp.ne.s32.totalorder %s123, %s137
      %p139 = scmp.eq.s32.totalorder %s24, 0
      %p140 = por %p138, %p139
      %s142 = sadd.s32 %s141, 1
      %p145 = scmp.eq.s32.totalorder %s18, 2
      %p146 = scmp.ne.s32.totalorder %s141, %s143
      %p147 = scmp.eq.s32.totalorder %s18, 0
      %p148 = por %p146, %p147
      %p149 = scmp.ne.s32.totalorder %s141, %s143
      %p150 = scmp.eq.s32.totalorder %s23, 2
      %p151 = por %p149, %p150
      %p152 = scmp.ne.s32.totalorder %s143, %s144
      %p153 = scmp.eq.s32.totalorder %s23, 0
      %p154 = por %p152, %p153
      %p155 = scmp.ne.s32.totalorder %s143, %s144
      %p156 = scmp.eq.s32.totalorder %s24, 2
      %p157 = por %p155, %p156
      %p159 = scmp.ne.s32.totalorder %s144, %s158
      %p160 = scmp.eq.s32.totalorder %s24, 0
      %p161 = por %p159, %p160
      %s163 = sadd.s32 %s162, 1
      %p166 = scmp.eq.s32.totalorder %s18, 2
      %p167 = scmp.ne.s32.totalorder %s162, %s164
      %p168 = scmp.eq.s32.totalorder %s18, 0
      %p169 = por %p167, %p168
      %p170 = scmp.ne.s32.totalorder %s162, %s164
      %p171 = scmp.eq.s32.totalorder %s23, 2
      %p172 = por %p170, %p171
      %p173 = scmp.ne.s32.totalorder %s164, %s165
      %p174 = scmp.eq.s32.totalorder %s23, 0
      %p175 = por %p173, %p174
      %p176 = scmp.ne.s32.totalorder %s164, %s165
      %p177 = scmp.eq.s32.totalorder %s24, 2
      %p178 = por %p176, %p177
      %p180 = scmp.ne.s32.totalorder %s165, %s179
      %p181 = scmp.eq.s32.totalorder %s24, 0
      %p182 = por %p180, %p181
      %s183 = ssub.s32 %s25, %s44
      %p184 = scmp.eq.s32.totalorder %s183, 0
      %s186 = sadd.s32 %s185, 1
      %s187 = scalar_select %p184, %s185, %s186
      %p190 = pneg %p184
      %p191 = scmp.eq.s32.totalorder %s18, 2
      %p192 = por %p190, %p191
      %p193 = scmp.ne.s32.totalorder %s185, %s188
      %p194 = scmp.eq.s32.totalorder %s18, 0
      %p195 = por %p193, %p194
      %p196 = scmp.ne.s32.totalorder %s185, %s188
      %p197 = scmp.eq.s32.totalorder %s23, 2
      %p198 = por %p196, %p197
      %p199 = scmp.ne.s32.totalorder %s188, %s189
      %p200 = scmp.eq.s32.totalorder %s23, 0
      %p201 = por %p199, %p200
      %p202 = scmp.ne.s32.totalorder %s188, %s189
      %p203 = scmp.eq.s32.totalorder %s24, 2
      %p204 = por %p202, %p203
      %p206 = scmp.ne.s32.totalorder %s189, %s205
      %p207 = scmp.eq.s32.totalorder %s24, 0
      %p208 = por %p206, %p207
      %s210 = sadd.s32 %s209, 1
      %p213 = scmp.eq.s32.totalorder %s18, 2
      %p214 = scmp.ne.s32.totalorder %s209, %s211
      %p215 = scmp.eq.s32.totalorder %s18, 0
      %p216 = por %p214, %p215
      %p217 = scmp.ne.s32.totalorder %s209, %s211
      %p218 = scmp.eq.s32.totalorder %s23, 2
      %p219 = por %p217, %p218
      %p220 = scmp.ne.s32.totalorder %s211, %s212
      %p221 = scmp.eq.s32.totalorder %s23, 0
      %p222 = por %p220, %p221
      %p223 = scmp.ne.s32.totalorder %s211, %s212
      %p224 = scmp.eq.s32.totalorder %s24, 2
      %p225 = por %p223, %p224
      %p227 = scmp.ne.s32.totalorder %s212, %s226
      %p228 = scmp.eq.s32.totalorder %s24, 0
      %p229 = por %p227, %p228
      %s230 = ssub.s32 %s26, %s40
      %p231 = scmp.eq.s32.totalorder %s230, 0
      %s233 = sadd.s32 %s232, 1
      %s234 = scalar_select %p231, %s232, %s233
      %p237 = pneg %p231
      %p238 = scmp.eq.s32.totalorder %s18, 2
      %p239 = por %p237, %p238
      %p240 = scmp.ne.s32.totalorder %s232, %s235
      %p241 = scmp.eq.s32.totalorder %s18, 0
      %p242 = por %p240, %p241
      %p243 = scmp.ne.s32.totalorder %s232, %s235
      %p244 = scmp.eq.s32.totalorder %s23, 2
      %p245 = por %p243, %p244
      %p246 = scmp.ne.s32.totalorder %s235, %s236
      %p247 = scmp.eq.s32.totalorder %s23, 0
      %p248 = por %p246, %p247
      %p249 = scmp.ne.s32.totalorder %s235, %s236
      %p250 = scmp.eq.s32.totalorder %s24, 2
      %p251 = por %p249, %p250
      %p253 = scmp.ne.s32.totalorder %s236, %s252
      %p254 = scmp.eq.s32.totalorder %s24, 0
      %p255 = por %p253, %p254
      %p256 = scmp.le.s32.totalorder 1, %s18
      %p257 = scmp.lt.s32.totalorder %s18, 4
      %p258 = pnand %p256, %p257
      %p259 = pneg %p258
      // Predicated region
      $region9: #{tpu_custom_call.1} parent=5 // pred_check
        _
      $region10: #{tpu_custom_call.1} parent=5 // pred_check_branch
        %261 = sbr.rel (%p258) target = $region12
      $region11: #{tpu_custom_call.1} parent=5 // pred_region
        %s262 = ssub.s32 %s18, 1
        // Predicated region
        $region13: #{tpu_custom_call.1} parent=11 // pred_check
          %p263 = pneg %p63
        $region14: #{tpu_custom_call.1} parent=11 // pred_check_branch
          %265 = sbr.rel (%p263) target = $region16
        $region15: #{tpu_custom_call.1} parent=11 // pred_region
          %s266 = smul.u32 16, %s29
          %s268 = ssub.s32 2048, 2048
          %269 = vsyncadd [#allocation7], %s268
          %s270 = smul.addr %s266, 128
          %s271 = scalar_lea.hbm %s0, %s270
          %s272 = sshll.u32 [#allocation6], 4
          %s273 = int_to_ptr.vmem [resolvable:$true] %s272
          %278 = dma.hbm_to_vmem [thread:$0]  %s271, 2048, %s273, [#allocation7], 128, 128, 8
        $region16: #{tpu_custom_call.1} parent=11 // pred_fallthru
          _
        // Predicated region
        $region17: #{tpu_custom_call.1} parent=11 // pred_check
          %p279 = pneg %p91
        $region18: #{tpu_custom_call.1} parent=11 // pred_check_branch
          %281 = sbr.rel (%p279) target = $region20
        $region19: #{tpu_custom_call.1} parent=11 // pred_region
          %s282 = smul.u32 16, %s29
          %s284 = ssub.s32 1024, 1024
          %285 = vsyncadd [#allocation10], %s284
          %s286 = sadd.s32 %s30, %s282
          %s287 = smul.addr %s286, 64
          %s288 = scalar_lea.hbm %s1, %s287
          %s289 = sshll.u32 [#allocation9], 4
          %s290 = int_to_ptr.vmem [resolvable:$true] %s289
          %295 = dma.hbm_to_vmem [thread:$0]  %s288, 1024, %s290, [#allocation10], 64, 64, 4
        $region20: #{tpu_custom_call.1} parent=11 // pred_fallthru
          _
        // Predicated region
        $region21: #{tpu_custom_call.1} parent=11 // pred_check
          %p296 = pneg %p112
        $region22: #{tpu_custom_call.1} parent=11 // pred_check_branch
          %298 = sbr.rel (%p296) target = $region24
        $region23: #{tpu_custom_call.1} parent=11 // pred_region
          %s300 = ssub.s32 2048, 2048
          %301 = vsyncadd [#allocation10], %s300
          %s302 = sshll.u32 [#allocation11], 4
          %s303 = int_to_ptr.vmem [resolvable:$true] %s302
          %308 = dma.hbm_to_vmem [thread:$0]  %s2, 2048, %s303, [#allocation10], 128, 128, 8
        $region24: #{tpu_custom_call.1} parent=11 // pred_fallthru
          _
        // Predicated region
        $region25: #{tpu_custom_call.1} parent=11 // pred_check
          %p309 = pneg %p133
        $region26: #{tpu_custom_call.1} parent=11 // pred_check_branch
          %311 = sbr.rel (%p309) target = $region28
        $region27: #{tpu_custom_call.1} parent=11 // pred_region
          _
        $region28: #{tpu_custom_call.1} parent=11 // pred_fallthru
          _
        // Predicated region
        $region29: #{tpu_custom_call.1} parent=11 // pred_check
          %p312 = pneg %p154
        $region30: #{tpu_custom_call.1} parent=11 // pred_check_branch
          %314 = sbr.rel (%p312) target = $region32
        $region31: #{tpu_custom_call.1} parent=11 // pred_region
          %s316 = ssub.s32 2048, 2048
          %317 = vsyncadd [#allocation13], %s316
          %s318 = sshll.u32 [#allocation12], 4
          %s319 = int_to_ptr.vmem [resolvable:$true] %s318
          %324 = dma.hbm_to_vmem [thread:$0]  %s4, 2048, %s319, [#allocation13], 128, 128, 8
        $region32: #{tpu_custom_call.1} parent=11 // pred_fallthru
          _
        // Predicated region
        $region33: #{tpu_custom_call.1} parent=11 // pred_check
          %p325 = pneg %p175
        $region34: #{tpu_custom_call.1} parent=11 // pred_check_branch
          %327 = sbr.rel (%p325) target = $region36
        $region35: #{tpu_custom_call.1} parent=11 // pred_region
          _
        $region36: #{tpu_custom_call.1} parent=11 // pred_fallthru
          _
        // Predicated region
        $region37: #{tpu_custom_call.1} parent=11 // pred_check
          %p328 = pneg %p222
        $region38: #{tpu_custom_call.1} parent=11 // pred_check_branch
          %330 = sbr.rel (%p328) target = $region40
        $region39: #{tpu_custom_call.1} parent=11 // pred_region
          _
        $region40: #{tpu_custom_call.1} parent=11 // pred_fallthru
          _
      $region12: #{tpu_custom_call.1} parent=5 // pred_fallthru
        _
      %p331 = scmp.lt.s32.totalorder %s18, 3
      // Predicated region
      $region41: #{tpu_custom_call.1} parent=5 // pred_check
        %p332 = pneg %p331
      $region42: #{tpu_custom_call.1} parent=5 // pred_check_branch
        %334 = sbr.rel (%p332) target = $region44
      $region43: #{tpu_custom_call.1} parent=5 // pred_region
        // Predicated region
        $region45: #{tpu_custom_call.1} parent=43 // pred_check
          %p335 = pneg %p195
        $region46: #{tpu_custom_call.1} parent=43 // pred_check_branch
          %337 = sbr.rel (%p335) target = $region48
        $region47: #{tpu_custom_call.1} parent=43 // pred_region
          %s338 = sand.u32 %s18, 1
          %s339 = scalar_lea.sflag [#allocation7], %s338
          %s340 = sand.u32 %s185, 1
          %s341 = smul.addr %s340, 128
          %s342 = scalar_lea.vmem [#allocation14], %s341
          %s344 = ssub.s32 2048, 2048
          %345 = vsyncadd %s339, %s344
          %s346 = smul.addr %s25, 16
          %s347 = smul.addr %s346, 128
          %s348 = scalar_lea.hbm %s6, %s347
          %s349 = sshll.u32 %s342, 4
          %s350 = int_to_ptr.vmem [resolvable:$true] %s349
          %355 = dma.hbm_to_vmem [thread:$0]  %s348, 2048, %s350, %s339, 128, 128, 8
        $region48: #{tpu_custom_call.1} parent=43 // pred_fallthru
          _
      $region44: #{tpu_custom_call.1} parent=5 // pred_fallthru
        _
      %p356 = scmp.le.s32.totalorder 1, %s18
      %p357 = scmp.lt.s32.totalorder %s18, 4
      %p358 = pnand %p356, %p357
      %p359 = pneg %p358
      // Predicated region
      $region49: #{tpu_custom_call.1} parent=5 // pred_check
        _
      $region50: #{tpu_custom_call.1} parent=5 // pred_check_branch
        %361 = sbr.rel (%p358) target = $region52
      $region51: #{tpu_custom_call.1} parent=5 // pred_region
        %s362 = ssub.s32 %s18, 1
        // Predicated region
        $region53: #{tpu_custom_call.1} parent=51 // pred_check
          %p363 = pneg %p63
        $region54: #{tpu_custom_call.1} parent=51 // pred_check_branch
          %365 = sbr.rel (%p363) target = $region56
        $region55: #{tpu_custom_call.1} parent=51 // pred_region
          %366 = dma.done [#allocation7], 2048
        $region56: #{tpu_custom_call.1} parent=51 // pred_fallthru
          _
        // Predicated region
        $region57: #{tpu_custom_call.1} parent=51 // pred_check
          %p367 = pneg %p91
        $region58: #{tpu_custom_call.1} parent=51 // pred_check_branch
          %369 = sbr.rel (%p367) target = $region60
        $region59: #{tpu_custom_call.1} parent=51 // pred_region
          %370 = dma.done [#allocation10], 1024
        $region60: #{tpu_custom_call.1} parent=51 // pred_fallthru
          _
        // Predicated region
        $region61: #{tpu_custom_call.1} parent=51 // pred_check
          %p371 = pneg %p112
        $region62: #{tpu_custom_call.1} parent=51 // pred_check_branch
          %373 = sbr.rel (%p371) target = $region64
        $region63: #{tpu_custom_call.1} parent=51 // pred_region
          %374 = dma.done [#allocation10], 2048
        $region64: #{tpu_custom_call.1} parent=51 // pred_fallthru
          _
        // Predicated region
        $region65: #{tpu_custom_call.1} parent=51 // pred_check
          %p375 = pneg %p154
        $region66: #{tpu_custom_call.1} parent=51 // pred_check_branch
          %377 = sbr.rel (%p375) target = $region68
        $region67: #{tpu_custom_call.1} parent=51 // pred_region
          %378 = dma.done [#allocation13], 2048
        $region68: #{tpu_custom_call.1} parent=51 // pred_fallthru
          _
        %s379 = sand.u32 %s23, 1
        %s380 = scalar_lea.sflag [#allocation7], %s379
        %s381 = sand.u32 %s188, 1
        %s382 = smul.addr %s381, 128
        %s383 = scalar_lea.vmem [#allocation14], %s382
        // Predicated region
        $region69: #{tpu_custom_call.1} parent=51 // pred_check
          %p384 = pneg %p201
        $region70: #{tpu_custom_call.1} parent=51 // pred_check_branch
          %386 = sbr.rel (%p384) target = $region72
        $region71: #{tpu_custom_call.1} parent=51 // pred_region
          %387 = dma.done %s380, 2048
        $region72: #{tpu_custom_call.1} parent=51 // pred_fallthru
          _
        %p388 = pneg %p63
        %p389 = pneg %p60
        %p390 = pneg %p91
        %p391 = pneg %p88
        %p392 = pneg %p112
        %p393 = pneg %p109
        %p394 = pneg %p133
        %p395 = pneg %p130
        %p396 = pneg %p154
        %p397 = pneg %p151
        %p398 = pneg %p175
        %p399 = pneg %p172
        %s400 = sand.u32 %s23, 1
        %s401 = scalar_lea.sflag [#allocation7], %s400
        %s402 = sand.u32 %s188, 1
        %s403 = smul.addr %s402, 128
        %s404 = scalar_lea.vmem [#allocation14], %s403
        %p405 = pneg %p201
        %p406 = pneg %p198
        %p407 = pneg %p222
        %p408 = pneg %p219
        %p409 = pneg %p248
        %p410 = pneg %p245
        %s411 = smul.u32 16, %s29
        %s412 = smul.u32 16, %s29
        %s413 = smul.u32 16, %s29
        %s415 = smul.u32 %s29, 128
        %s416 = smul.u32 %s30, 128
        %v417 = vld [vmem:[%s383] sm:$0xff]
        %v418 = vld [vmem:[%s383 + $0x8] sm:$0xff]
        %v419 = vld [vmem:[%s383 + $0x10] sm:$0xff]
        %v420 = vld [vmem:[%s383 + $0x18] sm:$0xff]
        %v421 = vld [vmem:[%s383 + $0x20] sm:$0xff]
        %v422 = vld [vmem:[%s383 + $0x28] sm:$0xff]
        %v423 = vld [vmem:[%s383 + $0x30] sm:$0xff]
        %v424 = vld [vmem:[%s383 + $0x38] sm:$0xff]
        %v425 = vld [vmem:[%s383 + $0x40] sm:$0xff]
        %v426 = vld [vmem:[%s383 + $0x48] sm:$0xff]
        %v427 = vld [vmem:[%s383 + $0x50] sm:$0xff]
        %v428 = vld [vmem:[%s383 + $0x58] sm:$0xff]
        %v429 = vld [vmem:[%s383 + $0x60] sm:$0xff]
        %v430 = vld [vmem:[%s383 + $0x68] sm:$0xff]
        %v431 = vld [vmem:[%s383 + $0x70] sm:$0xff]
        %v432 = vld [vmem:[%s383 + $0x78] sm:$0xff]
        %p433 = scmp.eq.s32.totalorder %s28, 0
        %p434 = scmp.eq.s32.totalorder %s30, 0
        %p435 = pnand %p433, %p434
        %p436 = pneg %p435
        // Predicated region
        $region73: #{tpu_custom_call.1} parent=51 // pred_check
          _
        $region74: #{tpu_custom_call.1} parent=51 // pred_check_branch
          %438 = sbr.rel (%p435) target = $region76
        $region75: #{tpu_custom_call.1} parent=51 // pred_region
          %v439 = vld [vmem:[#allocation6] sm:$0xff]
          %v440 = vld [vmem:[#allocation6 + $0x8] sm:$0xff]
          %v441 = vld [vmem:[#allocation6 + $0x10] sm:$0xff]
          %v442 = vld [vmem:[#allocation6 + $0x18] sm:$0xff]
          %v443 = vld [vmem:[#allocation6 + $0x20] sm:$0xff]
          %v444 = vld [vmem:[#allocation6 + $0x28] sm:$0xff]
          %v445 = vld [vmem:[#allocation6 + $0x30] sm:$0xff]
          %v446 = vld [vmem:[#allocation6 + $0x38] sm:$0xff]
          %v447 = vld [vmem:[#allocation6 + $0x40] sm:$0xff]
          %v448 = vld [vmem:[#allocation6 + $0x48] sm:$0xff]
          %v449 = vld [vmem:[#allocation6 + $0x50] sm:$0xff]
          %v450 = vld [vmem:[#allocation6 + $0x58] sm:$0xff]
          %v451 = vld [vmem:[#allocation6 + $0x60] sm:$0xff]
          %v452 = vld [vmem:[#allocation6 + $0x68] sm:$0xff]
          %v453 = vld [vmem:[#allocation6 + $0x70] sm:$0xff]
          %v454 = vld [vmem:[#allocation6 + $0x78] sm:$0xff]
          %v455 = vld [vmem:[#allocation11] sm:$0xff]
          %v456 = vld [vmem:[#allocation11 + $0x8] sm:$0xff]
          %v457 = vld [vmem:[#allocation11 + $0x10] sm:$0xff]
          %v458 = vld [vmem:[#allocation11 + $0x18] sm:$0xff]
          %v459 = vld [vmem:[#allocation11 + $0x20] sm:$0xff]
          %v460 = vld [vmem:[#allocation11 + $0x28] sm:$0xff]
          %v461 = vld [vmem:[#allocation11 + $0x30] sm:$0xff]
          %v462 = vld [vmem:[#allocation11 + $0x38] sm:$0xff]
          %v463 = vld [vmem:[#allocation11 + $0x40] sm:$0xff]
          %v464 = vld [vmem:[#allocation11 + $0x48] sm:$0xff]
          %v465 = vld [vmem:[#allocation11 + $0x50] sm:$0xff]
          %v466 = vld [vmem:[#allocation11 + $0x58] sm:$0xff]
          %v467 = vld [vmem:[#allocation11 + $0x60] sm:$0xff]
          %v468 = vld [vmem:[#allocation11 + $0x68] sm:$0xff]
          %v469 = vld [vmem:[#allocation11 + $0x70] sm:$0xff]
          %v470 = vld [vmem:[#allocation11 + $0x78] sm:$0xff]
          %v471 = vld [vmem:[%s3] sm:$0x1]
          %v473 = vlaneseq
          %v474 = vshrl.u32 %v473, 7
          %v475 = vsub.s32 0, %v474
          %v476 = vrot.slane %v471, %v475
          %478 = vmatprep.subr.mxu0 0.0
          %479 = vmatpush1.msra.mxu0 %v470
          %480 = vmatprep.subr.mxu0 0.0
          %481 = vmatpush1.msra.mxu0 %v469
          %482 = vmatprep.subr.mxu0 0.0
          %483 = vmatpush1.msra.mxu0 %v468
          %484 = vmatprep.subr.mxu0 0.0
          %485 = vmatpush1.msra.mxu0 %v467
          %486 = vmatprep.subr.mxu0 0.0
          %487 = vmatpush1.msra.mxu0 %v466
          %488 = vmatprep.subr.mxu0 0.0
          %489 = vmatpush1.msra.mxu0 %v465
          %490 = vmatprep.subr.mxu0 0.0
          %491 = vmatpush1.msra.mxu0 %v464
          %492 = vmatprep.subr.mxu0 0.0
          %493 = vmatpush1.msra.mxu0 %v463
          %494 = vmatprep.subr.mxu0 0.0
          %495 = vmatpush1.msra.mxu0 %v462
          %496 = vmatprep.subr.mxu0 0.0
          %497 = vmatpush1.msra.mxu0 %v461
          %498 = vmatprep.subr.mxu0 0.0
          %499 = vmatpush1.msra.mxu0 %v460
          %500 = vmatprep.subr.mxu0 0.0
          %501 = vmatpush1.msra.mxu0 %v459
          %502 = vmatprep.subr.mxu0 0.0
          %503 = vmatpush1.msra.mxu0 %v458
          %504 = vmatprep.subr.mxu0 0.0
          %505 = vmatpush1.msra.mxu0 %v457
          %506 = vmatprep.subr.mxu0 0.0
          %507 = vmatpush1.msra.mxu0 %v456
          %508 = vmatprep.subr.mxu0 0.0
          %509 = vmatpush1.msra.mxu0 %v455
          %510 = vmatprep.subr.mxu0 0.0
          %511 = vmatpush2.msra.mxu0 0.0
          %512 = vmatprep.subr.mxu0 0.0
          %513 = vmatpush2.msra.mxu0 0.0
          %514 = vmatprep.subr.mxu0 0.0
          %515 = vmatpush2.msra.mxu0 0.0
          %516 = vmatprep.subr.mxu0 0.0
          %517 = vmatpush2.msra.mxu0 0.0
          %518 = vmatprep.subr.mxu0 0.0
          %519 = vmatpush2.msra.mxu0 0.0
          %520 = vmatprep.subr.mxu0 0.0
          %521 = vmatpush2.msra.mxu0 0.0
          %522 = vmatprep.subr.mxu0 0.0
          %523 = vmatpush2.msra.mxu0 0.0
          %524 = vmatprep.subr.mxu0 0.0
          %525 = vmatpush2.msra.mxu0 0.0
          %526 = vmatprep.subr.mxu0 0.0
          %527 = vmatpush2.msra.mxu0 0.0
          %528 = vmatprep.subr.mxu0 0.0
          %529 = vmatpush2.msra.mxu0 0.0
          %530 = vmatprep.subr.mxu0 0.0
          %531 = vmatpush2.msra.mxu0 0.0
          %532 = vmatprep.subr.mxu0 0.0
          %533 = vmatpush2.msra.mxu0 0.0
          %534 = vmatprep.subr.mxu0 0.0
          %535 = vmatpush2.msra.mxu0 0.0
          %536 = vmatprep.subr.mxu0 0.0
          %537 = vmatpush2.msra.mxu0 0.0
          %538 = vmatprep.subr.mxu0 0.0
          %539 = vmatpush2.msra.mxu0 0.0
          %540 = vmatprep.subr.mxu0 0.0
          %541 = vmatpush2.msra.mxu0 0.0
          %542 = vmatprep.mubr.f32.mxu0 0.0
          %543 = vmatmul.mubr.f32.gmra.mxu0 %v439
          %v544 = vpop.f32.mrf.mxu0
          %v545 = vadd.f32 %v476, %v544
          %v546 = vpop.f32.mrf.mxu0
          %547 = vmatprep.mubr.f32.mxu0 0.0
          %548 = vmatmul.mubr.f32.gmra.mxu0 %v440
          %v549 = vpop.f32.mrf.mxu0
          %v550 = vadd.f32 %v476, %v549
          %v551 = vpop.f32.mrf.mxu0
          %552 = vmatprep.mubr.f32.mxu0 0.0
          %553 = vmatmul.mubr.f32.gmra.mxu0 %v441
          %v554 = vpop.f32.mrf.mxu0
          %v555 = vadd.f32 %v476, %v554
          %v556 = vpop.f32.mrf.mxu0
          %557 = vmatprep.mubr.f32.mxu0 0.0
          %558 = vmatmul.mubr.f32.gmra.mxu0 %v442
          %v559 = vpop.f32.mrf.mxu0
          %v560 = vadd.f32 %v476, %v559
          %v561 = vpop.f32.mrf.mxu0
          %562 = vmatprep.mubr.f32.mxu0 0.0
          %563 = vmatmul.mubr.f32.gmra.mxu0 %v443
          %v564 = vpop.f32.mrf.mxu0
          %v565 = vadd.f32 %v476, %v564
          %v566 = vpop.f32.mrf.mxu0
          %567 = vmatprep.mubr.f32.mxu0 0.0
          %568 = vmatmul.mubr.f32.gmra.mxu0 %v444
          %v569 = vpop.f32.mrf.mxu0
          %v570 = vadd.f32 %v476, %v569
          %v571 = vpop.f32.mrf.mxu0
          %572 = vmatprep.mubr.f32.mxu0 0.0
          %573 = vmatmul.mubr.f32.gmra.mxu0 %v445
          %v574 = vpop.f32.mrf.mxu0
          %v575 = vadd.f32 %v476, %v574
          %v576 = vpop.f32.mrf.mxu0
          %577 = vmatprep.mubr.f32.mxu0 0.0
          %578 = vmatmul.mubr.f32.gmra.mxu0 %v446
          %v579 = vpop.f32.mrf.mxu0
          %v580 = vadd.f32 %v476, %v579
          %v581 = vpop.f32.mrf.mxu0
          %582 = vmatprep.mubr.f32.mxu0 0.0
          %583 = vmatmul.mubr.f32.gmra.mxu0 %v447
          %v584 = vpop.f32.mrf.mxu0
          %v585 = vadd.f32 %v476, %v584
          %v586 = vpop.f32.mrf.mxu0
          %587 = vmatprep.mubr.f32.mxu0 0.0
          %588 = vmatmul.mubr.f32.gmra.mxu0 %v448
          %v589 = vpop.f32.mrf.mxu0
          %v590 = vadd.f32 %v476, %v589
          %v591 = vpop.f32.mrf.mxu0
          %592 = vmatprep.mubr.f32.mxu0 0.0
          %593 = vmatmul.mubr.f32.gmra.mxu0 %v449
          %v594 = vpop.f32.mrf.mxu0
          %v595 = vadd.f32 %v476, %v594
          %v596 = vpop.f32.mrf.mxu0
          %597 = vmatprep.mubr.f32.mxu0 0.0
          %598 = vmatmul.mubr.f32.gmra.mxu0 %v450
          %v599 = vpop.f32.mrf.mxu0
          %v600 = vadd.f32 %v476, %v599
          %v601 = vpop.f32.mrf.mxu0
          %602 = vmatprep.mubr.f32.mxu0 0.0
          %603 = vmatmul.mubr.f32.gmra.mxu0 %v451
          %v604 = vpop.f32.mrf.mxu0
          %v605 = vadd.f32 %v476, %v604
          %v606 = vpop.f32.mrf.mxu0
          %607 = vmatprep.mubr.f32.mxu0 0.0
          %608 = vmatmul.mubr.f32.gmra.mxu0 %v452
          %v609 = vpop.f32.mrf.mxu0
          %v610 = vadd.f32 %v476, %v609
          %v611 = vpop.f32.mrf.mxu0
          %612 = vmatprep.mubr.f32.mxu0 0.0
          %613 = vmatmul.mubr.f32.gmra.mxu0 %v453
          %v614 = vpop.f32.mrf.mxu0
          %v615 = vadd.f32 %v476, %v614
          %v616 = vpop.f32.mrf.mxu0
          %617 = vmatprep.mubr.f32.mxu0 0.0
          %618 = vmatmul.mubr.f32.gmra.mxu0 %v454
          %v619 = vpop.f32.mrf.mxu0
          %v620 = vadd.f32 %v476, %v619
          %v621 = vpop.f32.mrf.mxu0
          %622 = vdwg.mxu0
          %v623 = vmax.f32 %v545, 0.0
          %v624 = vmax.f32 %v550, 0.0
          %v625 = vmax.f32 %v555, 0.0
          %v626 = vmax.f32 %v560, 0.0
          %v627 = vmax.f32 %v565, 0.0
          %v628 = vmax.f32 %v570, 0.0
          %v629 = vmax.f32 %v575, 0.0
          %v630 = vmax.f32 %v580, 0.0
          %v631 = vmax.f32 %v585, 0.0
          %v632 = vmax.f32 %v590, 0.0
          %v633 = vmax.f32 %v595, 0.0
          %v634 = vmax.f32 %v600, 0.0
          %v635 = vmax.f32 %v605, 0.0
          %v636 = vmax.f32 %v610, 0.0
          %v637 = vmax.f32 %v615, 0.0
          %v638 = vmax.f32 %v620, 0.0
          %v639 = vld [vmem:[#allocation12] sm:$0xff]
          %v640 = vld [vmem:[#allocation12 + $0x8] sm:$0xff]
          %v641 = vld [vmem:[#allocation12 + $0x10] sm:$0xff]
          %v642 = vld [vmem:[#allocation12 + $0x18] sm:$0xff]
          %v643 = vld [vmem:[#allocation12 + $0x20] sm:$0xff]
          %v644 = vld [vmem:[#allocation12 + $0x28] sm:$0xff]
          %v645 = vld [vmem:[#allocation12 + $0x30] sm:$0xff]
          %v646 = vld [vmem:[#allocation12 + $0x38] sm:$0xff]
          %v647 = vld [vmem:[#allocation12 + $0x40] sm:$0xff]
          %v648 = vld [vmem:[#allocation12 + $0x48] sm:$0xff]
          %v649 = vld [vmem:[#allocation12 + $0x50] sm:$0xff]
          %v650 = vld [vmem:[#allocation12 + $0x58] sm:$0xff]
          %v651 = vld [vmem:[#allocation12 + $0x60] sm:$0xff]
          %v652 = vld [vmem:[#allocation12 + $0x68] sm:$0xff]
          %v653 = vld [vmem:[#allocation12 + $0x70] sm:$0xff]
          %v654 = vld [vmem:[#allocation12 + $0x78] sm:$0xff]
          %v655 = vld [vmem:[%s5] sm:$0x1]
          %v657 = vlaneseq
          %v658 = vshrl.u32 %v657, 7
          %v659 = vsub.s32 0, %v658
          %v660 = vrot.slane %v655, %v659
          %662 = vmatprep.subr.mxu0 0.0
          %663 = vmatpush1.msra.mxu0 %v654
          %664 = vmatprep.subr.mxu0 0.0
          %665 = vmatpush1.msra.mxu0 %v653
          %666 = vmatprep.subr.mxu0 0.0
          %667 = vmatpush1.msra.mxu0 %v652
          %668 = vmatprep.subr.mxu0 0.0
          %669 = vmatpush1.msra.mxu0 %v651
          %670 = vmatprep.subr.mxu0 0.0
          %671 = vmatpush1.msra.mxu0 %v650
          %672 = vmatprep.subr.mxu0 0.0
          %673 = vmatpush1.msra.mxu0 %v649
          %674 = vmatprep.subr.mxu0 0.0
          %675 = vmatpush1.msra.mxu0 %v648
          %676 = vmatprep.subr.mxu0 0.0
          %677 = vmatpush1.msra.mxu0 %v647
          %678 = vmatprep.subr.mxu0 0.0
          %679 = vmatpush1.msra.mxu0 %v646
          %680 = vmatprep.subr.mxu0 0.0
          %681 = vmatpush1.msra.mxu0 %v645
          %682 = vmatprep.subr.mxu0 0.0
          %683 = vmatpush1.msra.mxu0 %v644
          %684 = vmatprep.subr.mxu0 0.0
          %685 = vmatpush1.msra.mxu0 %v643
          %686 = vmatprep.subr.mxu0 0.0
          %687 = vmatpush1.msra.mxu0 %v642
          %688 = vmatprep.subr.mxu0 0.0
          %689 = vmatpush1.msra.mxu0 %v641
          %690 = vmatprep.subr.mxu0 0.0
          %691 = vmatpush1.msra.mxu0 %v640
          %692 = vmatprep.subr.mxu0 0.0
          %693 = vmatpush1.msra.mxu0 %v639
          %694 = vmatprep.subr.mxu0 0.0
          %695 = vmatpush2.msra.mxu0 0.0
          %696 = vmatprep.subr.mxu0 0.0
          %697 = vmatpush2.msra.mxu0 0.0
          %698 = vmatprep.subr.mxu0 0.0
          %699 = vmatpush2.msra.mxu0 0.0
          %700 = vmatprep.subr.mxu0 0.0
          %701 = vmatpush2.msra.mxu0 0.0
          %702 = vmatprep.subr.mxu0 0.0
          %703 = vmatpush2.msra.mxu0 0.0
          %704 = vmatprep.subr.mxu0 0.0
          %705 = vmatpush2.msra.mxu0 0.0
          %706 = vmatprep.subr.mxu0 0.0
          %707 = vmatpush2.msra.mxu0 0.0
          %708 = vmatprep.subr.mxu0 0.0
          %709 = vmatpush2.msra.mxu0 0.0
          %710 = vmatprep.subr.mxu0 0.0
          %711 = vmatpush2.msra.mxu0 0.0
          %712 = vmatprep.subr.mxu0 0.0
          %713 = vmatpush2.msra.mxu0 0.0
          %714 = vmatprep.subr.mxu0 0.0
          %715 = vmatpush2.msra.mxu0 0.0
          %716 = vmatprep.subr.mxu0 0.0
          %717 = vmatpush2.msra.mxu0 0.0
          %718 = vmatprep.subr.mxu0 0.0
          %719 = vmatpush2.msra.mxu0 0.0
          %720 = vmatprep.subr.mxu0 0.0
          %721 = vmatpush2.msra.mxu0 0.0
          %722 = vmatprep.subr.mxu0 0.0
          %723 = vmatpush2.msra.mxu0 0.0
          %724 = vmatprep.subr.mxu0 0.0
          %725 = vmatpush2.msra.mxu0 0.0
          %726 = vmatprep.mubr.f32.mxu0 0.0
          %727 = vmatmul.mubr.f32.gmra.mxu0 %v623
          %v728 = vpop.f32.mrf.mxu0
          %v729 = vadd.f32 %v660, %v728
          %v730 = vpop.f32.mrf.mxu0
          %731 = vmatprep.mubr.f32.mxu0 0.0
          %732 = vmatmul.mubr.f32.gmra.mxu0 %v624
          %v733 = vpop.f32.mrf.mxu0
          %v734 = vadd.f32 %v660, %v733
          %v735 = vpop.f32.mrf.mxu0
          %736 = vmatprep.mubr.f32.mxu0 0.0
          %737 = vmatmul.mubr.f32.gmra.mxu0 %v625
          %v738 = vpop.f32.mrf.mxu0
          %v739 = vadd.f32 %v660, %v738
          %v740 = vpop.f32.mrf.mxu0
          %741 = vmatprep.mubr.f32.mxu0 0.0
          %742 = vmatmul.mubr.f32.gmra.mxu0 %v626
          %v743 = vpop.f32.mrf.mxu0
          %v744 = vadd.f32 %v660, %v743
          %v745 = vpop.f32.mrf.mxu0
          %746 = vmatprep.mubr.f32.mxu0 0.0
          %747 = vmatmul.mubr.f32.gmra.mxu0 %v627
          %v748 = vpop.f32.mrf.mxu0
          %v749 = vadd.f32 %v660, %v748
          %v750 = vpop.f32.mrf.mxu0
          %751 = vmatprep.mubr.f32.mxu0 0.0
          %752 = vmatmul.mubr.f32.gmra.mxu0 %v628
          %v753 = vpop.f32.mrf.mxu0
          %v754 = vadd.f32 %v660, %v753
          %v755 = vpop.f32.mrf.mxu0
          %756 = vmatprep.mubr.f32.mxu0 0.0
          %757 = vmatmul.mubr.f32.gmra.mxu0 %v629
          %v758 = vpop.f32.mrf.mxu0
          %v759 = vadd.f32 %v660, %v758
          %v760 = vpop.f32.mrf.mxu0
          %761 = vmatprep.mubr.f32.mxu0 0.0
          %762 = vmatmul.mubr.f32.gmra.mxu0 %v630
          %v763 = vpop.f32.mrf.mxu0
          %v764 = vadd.f32 %v660, %v763
          %v765 = vpop.f32.mrf.mxu0
          %766 = vmatprep.mubr.f32.mxu0 0.0
          %767 = vmatmul.mubr.f32.gmra.mxu0 %v631
          %v768 = vpop.f32.mrf.mxu0
          %v769 = vadd.f32 %v660, %v768
          %v770 = vpop.f32.mrf.mxu0
          %771 = vmatprep.mubr.f32.mxu0 0.0
          %772 = vmatmul.mubr.f32.gmra.mxu0 %v632
          %v773 = vpop.f32.mrf.mxu0
          %v774 = vadd.f32 %v660, %v773
          %v775 = vpop.f32.mrf.mxu0
          %776 = vmatprep.mubr.f32.mxu0 0.0
          %777 = vmatmul.mubr.f32.gmra.mxu0 %v633
          %v778 = vpop.f32.mrf.mxu0
          %v779 = vadd.f32 %v660, %v778
          %v780 = vpop.f32.mrf.mxu0
          %781 = vmatprep.mubr.f32.mxu0 0.0
          %782 = vmatmul.mubr.f32.gmra.mxu0 %v634
          %v783 = vpop.f32.mrf.mxu0
          %v784 = vadd.f32 %v660, %v783
          %v785 = vpop.f32.mrf.mxu0
          %786 = vmatprep.mubr.f32.mxu0 0.0
          %787 = vmatmul.mubr.f32.gmra.mxu0 %v635
          %v788 = vpop.f32.mrf.mxu0
          %v789 = vadd.f32 %v660, %v788
          %v790 = vpop.f32.mrf.mxu0
          %791 = vmatprep.mubr.f32.mxu0 0.0
          %792 = vmatmul.mubr.f32.gmra.mxu0 %v636
          %v793 = vpop.f32.mrf.mxu0
          %v794 = vadd.f32 %v660, %v793
          %v795 = vpop.f32.mrf.mxu0
          %796 = vmatprep.mubr.f32.mxu0 0.0
          %797 = vmatmul.mubr.f32.gmra.mxu0 %v637
          %v798 = vpop.f32.mrf.mxu0
          %v799 = vadd.f32 %v660, %v798
          %v800 = vpop.f32.mrf.mxu0
          %801 = vmatprep.mubr.f32.mxu0 0.0
          %802 = vmatmul.mubr.f32.gmra.mxu0 %v638
          %v803 = vpop.f32.mrf.mxu0
          %v804 = vadd.f32 %v660, %v803
          %v805 = vpop.f32.mrf.mxu0
          %806 = vdwg.mxu0
          %v807 = vmax.f32 %v729, 0.0
          %v808 = vmax.f32 %v734, 0.0
          %v809 = vmax.f32 %v739, 0.0
          %v810 = vmax.f32 %v744, 0.0
          %v811 = vmax.f32 %v749, 0.0
          %v812 = vmax.f32 %v754, 0.0
          %v813 = vmax.f32 %v759, 0.0
          %v814 = vmax.f32 %v764, 0.0
          %v815 = vmax.f32 %v769, 0.0
          %v816 = vmax.f32 %v774, 0.0
          %v817 = vmax.f32 %v779, 0.0
          %v818 = vmax.f32 %v784, 0.0
          %v819 = vmax.f32 %v789, 0.0
          %v820 = vmax.f32 %v794, 0.0
          %v821 = vmax.f32 %v799, 0.0
          %v822 = vmax.f32 %v804, 0.0
          %s823 = scalar_lea.vmem [#allocation2], %s415
          %824 = vst [vmem:[%s823] sm:$0xff] %v807
          %825 = vst [vmem:[%s823 + $0x8] sm:$0xff] %v808
          %826 = vst [vmem:[%s823 + $0x10] sm:$0xff] %v809
          %827 = vst [vmem:[%s823 + $0x18] sm:$0xff] %v810
          %828 = vst [vmem:[%s823 + $0x20] sm:$0xff] %v811
          %829 = vst [vmem:[%s823 + $0x28] sm:$0xff] %v812
          %830 = vst [vmem:[%s823 + $0x30] sm:$0xff] %v813
          %831 = vst [vmem:[%s823 + $0x38] sm:$0xff] %v814
          %832 = vst [vmem:[%s823 + $0x40] sm:$0xff] %v815
          %833 = vst [vmem:[%s823 + $0x48] sm:$0xff] %v816
          %834 = vst [vmem:[%s823 + $0x50] sm:$0xff] %v817
          %835 = vst [vmem:[%s823 + $0x58] sm:$0xff] %v818
          %836 = vst [vmem:[%s823 + $0x60] sm:$0xff] %v819
          %837 = vst [vmem:[%s823 + $0x68] sm:$0xff] %v820
          %838 = vst [vmem:[%s823 + $0x70] sm:$0xff] %v821
          %839 = vst [vmem:[%s823 + $0x78] sm:$0xff] %v822
          %840 = vmatprep.subr.mxu0 0.0
          %841 = vmatpush1.msra.mxu0 %v432
          %842 = vmatprep.subr.mxu0 0.0
          %843 = vmatpush1.msra.mxu0 %v431
          %844 = vmatprep.subr.mxu0 0.0
          %845 = vmatpush1.msra.mxu0 %v430
          %846 = vmatprep.subr.mxu0 0.0
          %847 = vmatpush1.msra.mxu0 %v429
          %848 = vmatprep.subr.mxu0 0.0
          %849 = vmatpush1.msra.mxu0 %v428
          %850 = vmatprep.subr.mxu0 0.0
          %851 = vmatpush1.msra.mxu0 %v427
          %852 = vmatprep.subr.mxu0 0.0
          %853 = vmatpush1.msra.mxu0 %v426
          %854 = vmatprep.subr.mxu0 0.0
          %855 = vmatpush1.msra.mxu0 %v425
          %856 = vmatprep.subr.mxu0 0.0
          %857 = vmatpush1.msra.mxu0 %v424
          %858 = vmatprep.subr.mxu0 0.0
          %859 = vmatpush1.msra.mxu0 %v423
          %860 = vmatprep.subr.mxu0 0.0
          %861 = vmatpush1.msra.mxu0 %v422
          %862 = vmatprep.subr.mxu0 0.0
          %863 = vmatpush1.msra.mxu0 %v421
          %864 = vmatprep.subr.mxu0 0.0
          %865 = vmatpush1.msra.mxu0 %v420
          %866 = vmatprep.subr.mxu0 0.0
          %867 = vmatpush1.msra.mxu0 %v419
          %868 = vmatprep.subr.mxu0 0.0
          %869 = vmatpush1.msra.mxu0 %v418
          %870 = vmatprep.subr.mxu0 0.0
          %871 = vmatpush1.msra.mxu0 %v417
          %872 = vmatprep.subr.mxu0 0.0
          %873 = vmatpush2.msra.mxu0 0.0
          %874 = vmatprep.subr.mxu0 0.0
          %875 = vmatpush2.msra.mxu0 0.0
          %876 = vmatprep.subr.mxu0 0.0
          %877 = vmatpush2.msra.mxu0 0.0
          %878 = vmatprep.subr.mxu0 0.0
          %879 = vmatpush2.msra.mxu0 0.0
          %880 = vmatprep.subr.mxu0 0.0
          %881 = vmatpush2.msra.mxu0 0.0
          %882 = vmatprep.subr.mxu0 0.0
          %883 = vmatpush2.msra.mxu0 0.0
          %884 = vmatprep.subr.mxu0 0.0
          %885 = vmatpush2.msra.mxu0 0.0
          %886 = vmatprep.subr.mxu0 0.0
          %887 = vmatpush2.msra.mxu0 0.0
          %888 = vmatprep.subr.mxu0 0.0
          %889 = vmatpush2.msra.mxu0 0.0
          %890 = vmatprep.subr.mxu0 0.0
          %891 = vmatpush2.msra.mxu0 0.0
          %892 = vmatprep.subr.mxu0 0.0
          %893 = vmatpush2.msra.mxu0 0.0
          %894 = vmatprep.subr.mxu0 0.0
          %895 = vmatpush2.msra.mxu0 0.0
          %896 = vmatprep.subr.mxu0 0.0
          %897 = vmatpush2.msra.mxu0 0.0
          %898 = vmatprep.subr.mxu0 0.0
          %899 = vmatpush2.msra.mxu0 0.0
          %900 = vmatprep.subr.mxu0 0.0
          %901 = vmatpush2.msra.mxu0 0.0
          %902 = vmatprep.subr.mxu0 0.0
          %903 = vmatpush2.msra.mxu0 0.0
          %904 = vmatprep.mubr.f32.mxu0 0.0
          %905 = vmatmul.mubr.f32.gmra.mxu0 %v807
          %v906 = vpop.f32.mrf.mxu0
          %v907 = vadd.f32 0.0, %v906
          %v908 = vpop.f32.mrf.mxu0
          %909 = vmatprep.mubr.f32.mxu0 0.0
          %910 = vmatmul.mubr.f32.gmra.mxu0 %v808
          %v911 = vpop.f32.mrf.mxu0
          %v912 = vadd.f32 0.0, %v911
          %v913 = vpop.f32.mrf.mxu0
          %914 = vmatprep.mubr.f32.mxu0 0.0
          %915 = vmatmul.mubr.f32.gmra.mxu0 %v809
          %v916 = vpop.f32.mrf.mxu0
          %v917 = vadd.f32 0.0, %v916
          %v918 = vpop.f32.mrf.mxu0
          %919 = vmatprep.mubr.f32.mxu0 0.0
          %920 = vmatmul.mubr.f32.gmra.mxu0 %v810
          %v921 = vpop.f32.mrf.mxu0
          %v922 = vadd.f32 0.0, %v921
          %v923 = vpop.f32.mrf.mxu0
          %924 = vmatprep.mubr.f32.mxu0 0.0
          %925 = vmatmul.mubr.f32.gmra.mxu0 %v811
          %v926 = vpop.f32.mrf.mxu0
          %v927 = vadd.f32 0.0, %v926
          %v928 = vpop.f32.mrf.mxu0
          %929 = vmatprep.mubr.f32.mxu0 0.0
          %930 = vmatmul.mubr.f32.gmra.mxu0 %v812
          %v931 = vpop.f32.mrf.mxu0
          %v932 = vadd.f32 0.0, %v931
          %v933 = vpop.f32.mrf.mxu0
          %934 = vmatprep.mubr.f32.mxu0 0.0
          %935 = vmatmul.mubr.f32.gmra.mxu0 %v813
          %v936 = vpop.f32.mrf.mxu0
          %v937 = vadd.f32 0.0, %v936
          %v938 = vpop.f32.mrf.mxu0
          %939 = vmatprep.mubr.f32.mxu0 0.0
          %940 = vmatmul.mubr.f32.gmra.mxu0 %v814
          %v941 = vpop.f32.mrf.mxu0
          %v942 = vadd.f32 0.0, %v941
          %v943 = vpop.f32.mrf.mxu0
          %944 = vmatprep.mubr.f32.mxu0 0.0
          %945 = vmatmul.mubr.f32.gmra.mxu0 %v815
          %v946 = vpop.f32.mrf.mxu0
          %v947 = vadd.f32 0.0, %v946
          %v948 = vpop.f32.mrf.mxu0
          %949 = vmatprep.mubr.f32.mxu0 0.0
          %950 = vmatmul.mubr.f32.gmra.mxu0 %v816
          %v951 = vpop.f32.mrf.mxu0
          %v952 = vadd.f32 0.0, %v951
          %v953 = vpop.f32.mrf.mxu0
          %954 = vmatprep.mubr.f32.mxu0 0.0
          %955 = vmatmul.mubr.f32.gmra.mxu0 %v817
          %v956 = vpop.f32.mrf.mxu0
          %v957 = vadd.f32 0.0, %v956
          %v958 = vpop.f32.mrf.mxu0
          %959 = vmatprep.mubr.f32.mxu0 0.0
          %960 = vmatmul.mubr.f32.gmra.mxu0 %v818
          %v961 = vpop.f32.mrf.mxu0
          %v962 = vadd.f32 0.0, %v961
          %v963 = vpop.f32.mrf.mxu0
          %964 = vmatprep.mubr.f32.mxu0 0.0
          %965 = vmatmul.mubr.f32.gmra.mxu0 %v819
          %v966 = vpop.f32.mrf.mxu0
          %v967 = vadd.f32 0.0, %v966
          %v968 = vpop.f32.mrf.mxu0
          %969 = vmatprep.mubr.f32.mxu0 0.0
          %970 = vmatmul.mubr.f32.gmra.mxu0 %v820
          %v971 = vpop.f32.mrf.mxu0
          %v972 = vadd.f32 0.0, %v971
          %v973 = vpop.f32.mrf.mxu0
          %974 = vmatprep.mubr.f32.mxu0 0.0
          %975 = vmatmul.mubr.f32.gmra.mxu0 %v821
          %v976 = vpop.f32.mrf.mxu0
          %v977 = vadd.f32 0.0, %v976
          %v978 = vpop.f32.mrf.mxu0
          %979 = vmatprep.mubr.f32.mxu0 0.0
          %980 = vmatmul.mubr.f32.gmra.mxu0 %v822
          %v981 = vpop.f32.mrf.mxu0
          %v982 = vadd.f32 0.0, %v981
          %v983 = vpop.f32.mrf.mxu0
          %984 = vdwg.mxu0
          %s985 = scalar_lea.vmem [#allocation4], %s415
          %986 = vst [vmem:[%s985] sm:$0xff] %v907
          %987 = vst [vmem:[%s985 + $0x8] sm:$0xff] %v912
          %988 = vst [vmem:[%s985 + $0x10] sm:$0xff] %v917
          %989 = vst [vmem:[%s985 + $0x18] sm:$0xff] %v922
          %990 = vst [vmem:[%s985 + $0x20] sm:$0xff] %v927
          %991 = vst [vmem:[%s985 + $0x28] sm:$0xff] %v932
          %992 = vst [vmem:[%s985 + $0x30] sm:$0xff] %v937
          %993 = vst [vmem:[%s985 + $0x38] sm:$0xff] %v942
          %994 = vst [vmem:[%s985 + $0x40] sm:$0xff] %v947
          %995 = vst [vmem:[%s985 + $0x48] sm:$0xff] %v952
          %996 = vst [vmem:[%s985 + $0x50] sm:$0xff] %v957
          %997 = vst [vmem:[%s985 + $0x58] sm:$0xff] %v962
          %998 = vst [vmem:[%s985 + $0x60] sm:$0xff] %v967
          %999 = vst [vmem:[%s985 + $0x68] sm:$0xff] %v972
          %1000 = vst [vmem:[%s985 + $0x70] sm:$0xff] %v977
          %1001 = vst [vmem:[%s985 + $0x78] sm:$0xff] %v982
          %v1002 = vld [vmem:[%s985] sm:$0xff]
          %v1003 = vld [vmem:[%s985 + $0x8] sm:$0xff]
          %v1004 = vld [vmem:[%s985 + $0x10] sm:$0xff]
          %v1005 = vld [vmem:[%s985 + $0x18] sm:$0xff]
          %v1006 = vld [vmem:[%s985 + $0x20] sm:$0xff]
          %v1007 = vld [vmem:[%s985 + $0x28] sm:$0xff]
          %v1008 = vld [vmem:[%s985 + $0x30] sm:$0xff]
          %v1009 = vld [vmem:[%s985 + $0x38] sm:$0xff]
          %v1010 = vld [vmem:[%s985 + $0x40] sm:$0xff]
          %v1011 = vld [vmem:[%s985 + $0x48] sm:$0xff]
          %v1012 = vld [vmem:[%s985 + $0x50] sm:$0xff]
          %v1013 = vld [vmem:[%s985 + $0x58] sm:$0xff]
          %v1014 = vld [vmem:[%s985 + $0x60] sm:$0xff]
          %v1015 = vld [vmem:[%s985 + $0x68] sm:$0xff]
          %v1016 = vld [vmem:[%s985 + $0x70] sm:$0xff]
          %v1017 = vld [vmem:[%s985 + $0x78] sm:$0xff]
          %v1018 = vld [vmem:[%s7] sm:$0x1]
          %v1020 = vlaneseq
          %v1021 = vshrl.u32 %v1020, 7
          %v1022 = vsub.s32 0, %v1021
          %v1023 = vrot.slane %v1018, %v1022
          %v1025 = vadd.f32 %v1002, %v1023
          %v1026 = vadd.f32 %v1003, %v1023
          %v1027 = vadd.f32 %v1004, %v1023
          %v1028 = vadd.f32 %v1005, %v1023
          %v1029 = vadd.f32 %v1006, %v1023
          %v1030 = vadd.f32 %v1007, %v1023
          %v1031 = vadd.f32 %v1008, %v1023
          %v1032 = vadd.f32 %v1009, %v1023
          %v1033 = vadd.f32 %v1010, %v1023
          %v1034 = vadd.f32 %v1011, %v1023
          %v1035 = vadd.f32 %v1012, %v1023
          %v1036 = vadd.f32 %v1013, %v1023
          %v1037 = vadd.f32 %v1014, %v1023
          %v1038 = vadd.f32 %v1015, %v1023
          %v1039 = vadd.f32 %v1016, %v1023
          %v1040 = vadd.f32 %v1017, %v1023
          %v1041 = vmax.f32 %v1025, 0.0
          %v1042 = vmax.f32 %v1026, 0.0
          %v1043 = vmax.f32 %v1027, 0.0
          %v1044 = vmax.f32 %v1028, 0.0
          %v1045 = vmax.f32 %v1029, 0.0
          %v1046 = vmax.f32 %v1030, 0.0
          %v1047 = vmax.f32 %v1031, 0.0
          %v1048 = vmax.f32 %v1032, 0.0
          %v1049 = vmax.f32 %v1033, 0.0
          %v1050 = vmax.f32 %v1034, 0.0
          %v1051 = vmax.f32 %v1035, 0.0
          %v1052 = vmax.f32 %v1036, 0.0
          %v1053 = vmax.f32 %v1037, 0.0
          %v1054 = vmax.f32 %v1038, 0.0
          %v1055 = vmax.f32 %v1039, 0.0
          %v1056 = vmax.f32 %v1040, 0.0
          %1057 = vst [vmem:[#allocation15] sm:$0xff] %v1041
          %1058 = vst [vmem:[#allocation15 + $0x8] sm:$0xff] %v1042
          %1059 = vst [vmem:[#allocation15 + $0x10] sm:$0xff] %v1043
          %1060 = vst [vmem:[#allocation15 + $0x18] sm:$0xff] %v1044
          %1061 = vst [vmem:[#allocation15 + $0x20] sm:$0xff] %v1045
          %1062 = vst [vmem:[#allocation15 + $0x28] sm:$0xff] %v1046
          %1063 = vst [vmem:[#allocation15 + $0x30] sm:$0xff] %v1047
          %1064 = vst [vmem:[#allocation15 + $0x38] sm:$0xff] %v1048
          %1065 = vst [vmem:[#allocation15 + $0x40] sm:$0xff] %v1049
          %1066 = vst [vmem:[#allocation15 + $0x48] sm:$0xff] %v1050
          %1067 = vst [vmem:[#allocation15 + $0x50] sm:$0xff] %v1051
          %1068 = vst [vmem:[#allocation15 + $0x58] sm:$0xff] %v1052
          %1069 = vst [vmem:[#allocation15 + $0x60] sm:$0xff] %v1053
          %1070 = vst [vmem:[#allocation15 + $0x68] sm:$0xff] %v1054
          %1071 = vst [vmem:[#allocation15 + $0x70] sm:$0xff] %v1055
          %1072 = vst [vmem:[#allocation15 + $0x78] sm:$0xff] %v1056
        $region76: #{tpu_custom_call.1} parent=51 // pred_fallthru
          _
        %p1073 = scmp.gt.s32.totalorder %s28, 0
        %p1074 = scmp.lt.s32.totalorder %s28, 0
        %s1075 = ssub.s32 0, %s28
        %s1076 = scalar_select %p1074, %s1075, %s28
        %s1077 = sand.u32 %s1076, 1
        %s1078 = ssub.s32 0, %s1077
        %s1079 = scalar_select %p1074, %s1078, %s1077
        %p1080 = scmp.ne.s32.totalorder %s1079, 0
        %p1081 = scmp.lt.s32.totalorder %s1079, 0
        %p1082 = pnand %p1081, %p1080
        %p1083 = pneg %p1082
        %s1084 = sadd.s32 %s1079, 2
        %s1085 = scalar_select %p1083, %s1084, %s1079
        %p1086 = scmp.eq.s32.totalorder %s1085, 1
        %p1087 = pnand %p1073, %p1086
        %p1088 = pneg %p1087
        // Predicated region
        $region77: #{tpu_custom_call.1} parent=51 // pred_check
          _
        $region78: #{tpu_custom_call.1} parent=51 // pred_check_branch
          %1090 = sbr.rel (%p1087) target = $region80
        $region79: #{tpu_custom_call.1} parent=51 // pred_region
          // Predicated region
          $region81: #{tpu_custom_call.1} parent=79 // pred_check
            %p1091 = pneg %p434
          $region82: #{tpu_custom_call.1} parent=79 // pred_check_branch
            %1093 = sbr.rel (%p1091) target = $region84
          $region83: #{tpu_custom_call.1} parent=79 // pred_region
            %1094 = vst [vmem:[#allocation5] sm:$0xff] 0.0
            %1095 = vst [vmem:[#allocation5 + $0x8] sm:$0xff] 0.0
            %1096 = vst [vmem:[#allocation5 + $0x10] sm:$0xff] 0.0
            %1097 = vst [vmem:[#allocation5 + $0x18] sm:$0xff] 0.0
            %1098 = vst [vmem:[#allocation5 + $0x20] sm:$0xff] 0.0
            %1099 = vst [vmem:[#allocation5 + $0x28] sm:$0xff] 0.0
            %1100 = vst [vmem:[#allocation5 + $0x30] sm:$0xff] 0.0
            %1101 = vst [vmem:[#allocation5 + $0x38] sm:$0xff] 0.0
            %1102 = vst [vmem:[#allocation5 + $0x40] sm:$0xff] 0.0
            %1103 = vst [vmem:[#allocation5 + $0x48] sm:$0xff] 0.0
            %1104 = vst [vmem:[#allocation5 + $0x50] sm:$0xff] 0.0
            %1105 = vst [vmem:[#allocation5 + $0x58] sm:$0xff] 0.0
            %1106 = vst [vmem:[#allocation5 + $0x60] sm:$0xff] 0.0
            %1107 = vst [vmem:[#allocation5 + $0x68] sm:$0xff] 0.0
            %1108 = vst [vmem:[#allocation5 + $0x70] sm:$0xff] 0.0
            %1109 = vst [vmem:[#allocation5 + $0x78] sm:$0xff] 0.0
          $region84: #{tpu_custom_call.1} parent=79 // pred_fallthru
            _
          %s1110 = scalar_lea.vmem [#allocation2], %s416
          %v1111 = vld [vmem:[%s1110] sm:$0xff]
          %v1112 = vld [vmem:[%s1110 + $0x8] sm:$0xff]
          %v1113 = vld [vmem:[%s1110 + $0x10] sm:$0xff]
          %v1114 = vld [vmem:[%s1110 + $0x18] sm:$0xff]
          %v1115 = vld [vmem:[%s1110 + $0x20] sm:$0xff]
          %v1116 = vld [vmem:[%s1110 + $0x28] sm:$0xff]
          %v1117 = vld [vmem:[%s1110 + $0x30] sm:$0xff]
          %v1118 = vld [vmem:[%s1110 + $0x38] sm:$0xff]
          %v1119 = vld [vmem:[%s1110 + $0x40] sm:$0xff]
          %v1120 = vld [vmem:[%s1110 + $0x48] sm:$0xff]
          %v1121 = vld [vmem:[%s1110 + $0x50] sm:$0xff]
          %v1122 = vld [vmem:[%s1110 + $0x58] sm:$0xff]
          %v1123 = vld [vmem:[%s1110 + $0x60] sm:$0xff]
          %v1124 = vld [vmem:[%s1110 + $0x68] sm:$0xff]
          %v1125 = vld [vmem:[%s1110 + $0x70] sm:$0xff]
          %v1126 = vld [vmem:[%s1110 + $0x78] sm:$0xff]
          %v1127 = vpack.c.bf16 %v1112, %v1111
          %v1128 = vpack.c.bf16 %v1114, %v1113
          %v1129 = vpack.c.bf16 %v1116, %v1115
          %v1130 = vpack.c.bf16 %v1118, %v1117
          %v1131 = vpack.c.bf16 %v1120, %v1119
          %v1132 = vpack.c.bf16 %v1122, %v1121
          %v1133 = vpack.c.bf16 %v1124, %v1123
          %v1134 = vpack.c.bf16 %v1126, %v1125
          %v1135 = vld [vmem:[#allocation5] sm:$0xff]
          %v1136 = vld [vmem:[#allocation5 + $0x8] sm:$0xff]
          %v1137 = vld [vmem:[#allocation5 + $0x10] sm:$0xff]
          %v1138 = vld [vmem:[#allocation5 + $0x18] sm:$0xff]
          %v1139 = vld [vmem:[#allocation5 + $0x20] sm:$0xff]
          %v1140 = vld [vmem:[#allocation5 + $0x28] sm:$0xff]
          %v1141 = vld [vmem:[#allocation5 + $0x30] sm:$0xff]
          %v1142 = vld [vmem:[#allocation5 + $0x38] sm:$0xff]
          %v1143 = vld [vmem:[#allocation5 + $0x40] sm:$0xff]
          %v1144 = vld [vmem:[#allocation5 + $0x48] sm:$0xff]
          %v1145 = vld [vmem:[#allocation5 + $0x50] sm:$0xff]
          %v1146 = vld [vmem:[#allocation5 + $0x58] sm:$0xff]
          %v1147 = vld [vmem:[#allocation5 + $0x60] sm:$0xff]
          %v1148 = vld [vmem:[#allocation5 + $0x68] sm:$0xff]
          %v1149 = vld [vmem:[#allocation5 + $0x70] sm:$0xff]
          %v1150 = vld [vmem:[#allocation5 + $0x78] sm:$0xff]
          %v1151 = vld [vmem:[#allocation9] sm:$0xf]
          %v1152 = vld [vmem:[#allocation9 + $0x4] sm:$0xf]
          %v1153 = vld [vmem:[#allocation9 + $0x8] sm:$0xf]
          %v1154 = vld [vmem:[#allocation9 + $0xc] sm:$0xf]
          %v1155 = vld [vmem:[#allocation9 + $0x10] sm:$0xf]
          %v1156 = vld [vmem:[#allocation9 + $0x14] sm:$0xf]
          %v1157 = vld [vmem:[#allocation9 + $0x18] sm:$0xf]
          %v1158 = vld [vmem:[#allocation9 + $0x1c] sm:$0xf]
          %v1159 = vld [vmem:[#allocation9 + $0x20] sm:$0xf]
          %v1160 = vld [vmem:[#allocation9 + $0x24] sm:$0xf]
          %v1161 = vld [vmem:[#allocation9 + $0x28] sm:$0xf]
          %v1162 = vld [vmem:[#allocation9 + $0x2c] sm:$0xf]
          %v1163 = vld [vmem:[#allocation9 + $0x30] sm:$0xf]
          %v1164 = vld [vmem:[#allocation9 + $0x34] sm:$0xf]
          %v1165 = vld [vmem:[#allocation9 + $0x38] sm:$0xf]
          %v1166 = vld [vmem:[#allocation9 + $0x3c] sm:$0xf]
          %v1183 = vunpack.c.l.b16 %v1151
          %v1184 = vunpack.c.l.b16 %v1152
          %v1185 = vunpack.c.l.b16 %v1153
          %v1186 = vunpack.c.l.b16 %v1154
          %v1187 = vunpack.c.l.b16 %v1155
          %v1188 = vunpack.c.l.b16 %v1156
          %v1189 = vunpack.c.l.b16 %v1157
          %v1190 = vunpack.c.l.b16 %v1158
          %v1191 = vunpack.c.l.b16 %v1159
          %v1192 = vunpack.c.l.b16 %v1160
          %v1193 = vunpack.c.l.b16 %v1161
          %v1194 = vunpack.c.l.b16 %v1162
          %v1195 = vunpack.c.l.b16 %v1163
          %v1196 = vunpack.c.l.b16 %v1164
          %v1197 = vunpack.c.l.b16 %v1165
          %v1198 = vunpack.c.l.b16 %v1166
          %v1199 = vpack.c.b16 %v1184, %v1183
          %v1200 = vpack.c.b16 %v1186, %v1185
          %v1201 = vpack.c.b16 %v1188, %v1187
          %v1202 = vpack.c.b16 %v1190, %v1189
          %v1203 = vpack.c.b16 %v1192, %v1191
          %v1204 = vpack.c.b16 %v1194, %v1193
          %v1205 = vpack.c.b16 %v1196, %v1195
          %v1206 = vpack.c.b16 %v1198, %v1197
          %1215 = vmatprep.subr.bf16.mxu0 0
          %1216 = vmatpush1.bf16.msra.mxu0 %v1134
          %1217 = vmatprep.subr.bf16.mxu0 0
          %1218 = vmatpush1.bf16.msra.mxu0 %v1133
          %1219 = vmatprep.subr.bf16.mxu0 0
          %1220 = vmatpush1.bf16.msra.mxu0 %v1132
          %1221 = vmatprep.subr.bf16.mxu0 0
          %1222 = vmatpush1.bf16.msra.mxu0 %v1131
          %1223 = vmatprep.subr.bf16.mxu0 0
          %1224 = vmatpush1.bf16.msra.mxu0 %v1130
          %1225 = vmatprep.subr.bf16.mxu0 0
          %1226 = vmatpush1.bf16.msra.mxu0 %v1129
          %1227 = vmatprep.subr.bf16.mxu0 0
          %1228 = vmatpush1.bf16.msra.mxu0 %v1128
          %1229 = vmatprep.subr.bf16.mxu0 0
          %1230 = vmatpush1.bf16.msra.mxu0 %v1127
          %1231 = vmatprep.subr.bf16.mxu0 0
          %1232 = vmatpush2.bf16.msra.mxu0 0
          %1233 = vmatprep.subr.bf16.mxu0 0
          %1234 = vmatpush2.bf16.msra.mxu0 0
          %1235 = vmatprep.subr.bf16.mxu0 0
          %1236 = vmatpush2.bf16.msra.mxu0 0
          %1237 = vmatprep.subr.bf16.mxu0 0
          %1238 = vmatpush2.bf16.msra.mxu0 0
          %1239 = vmatprep.subr.bf16.mxu0 0
          %1240 = vmatpush2.bf16.msra.mxu0 0
          %1241 = vmatprep.subr.bf16.mxu0 0
          %1242 = vmatpush2.bf16.msra.mxu0 0
          %1243 = vmatprep.subr.bf16.mxu0 0
          %1244 = vmatpush2.bf16.msra.mxu0 0
          %1245 = vmatprep.subr.bf16.mxu0 0
          %1246 = vmatpush2.bf16.msra.mxu0 0
          %1247 = vmatprep.mubr.bf16.mxu0 0
          %1248 = vmatmul.mubr.bf16.gmra.mxu0 %v1199
          %v1249 = vpop.f32.mrf.mxu0
          %v1250 = vadd.f32 0.0, %v1249
          %v1251 = vpop.f32.mrf.mxu0
          %v1252 = vpop.f32.mrf.mxu0
          %v1253 = vadd.f32 0.0, %v1252
          %v1254 = vpop.f32.mrf.mxu0
          %1255 = vmatprep.mubr.bf16.mxu0 0
          %1256 = vmatmul.mubr.bf16.gmra.mxu0 %v1200
          %v1257 = vpop.f32.mrf.mxu0
          %v1258 = vadd.f32 0.0, %v1257
          %v1259 = vpop.f32.mrf.mxu0
          %v1260 = vpop.f32.mrf.mxu0
          %v1261 = vadd.f32 0.0, %v1260
          %v1262 = vpop.f32.mrf.mxu0
          %1263 = vmatprep.mubr.bf16.mxu0 0
          %1264 = vmatmul.mubr.bf16.gmra.mxu0 %v1201
          %v1265 = vpop.f32.mrf.mxu0
          %v1266 = vadd.f32 0.0, %v1265
          %v1267 = vpop.f32.mrf.mxu0
          %v1268 = vpop.f32.mrf.mxu0
          %v1269 = vadd.f32 0.0, %v1268
          %v1270 = vpop.f32.mrf.mxu0
          %1271 = vmatprep.mubr.bf16.mxu0 0
          %1272 = vmatmul.mubr.bf16.gmra.mxu0 %v1202
          %v1273 = vpop.f32.mrf.mxu0
          %v1274 = vadd.f32 0.0, %v1273
          %v1275 = vpop.f32.mrf.mxu0
          %v1276 = vpop.f32.mrf.mxu0
          %v1277 = vadd.f32 0.0, %v1276
          %v1278 = vpop.f32.mrf.mxu0
          %1279 = vmatprep.mubr.bf16.mxu0 0
          %1280 = vmatmul.mubr.bf16.gmra.mxu0 %v1203
          %v1281 = vpop.f32.mrf.mxu0
          %v1282 = vadd.f32 0.0, %v1281
          %v1283 = vpop.f32.mrf.mxu0
          %v1284 = vpop.f32.mrf.mxu0
          %v1285 = vadd.f32 0.0, %v1284
          %v1286 = vpop.f32.mrf.mxu0
          %1287 = vmatprep.mubr.bf16.mxu0 0
          %1288 = vmatmul.mubr.bf16.gmra.mxu0 %v1204
          %v1289 = vpop.f32.mrf.mxu0
          %v1290 = vadd.f32 0.0, %v1289
          %v1291 = vpop.f32.mrf.mxu0
          %v1292 = vpop.f32.mrf.mxu0
          %v1293 = vadd.f32 0.0, %v1292
          %v1294 = vpop.f32.mrf.mxu0
          %1295 = vmatprep.mubr.bf16.mxu0 0
          %1296 = vmatmul.mubr.bf16.gmra.mxu0 %v1205
          %v1297 = vpop.f32.mrf.mxu0
          %v1298 = vadd.f32 0.0, %v1297
          %v1299 = vpop.f32.mrf.mxu0
          %v1300 = vpop.f32.mrf.mxu0
          %v1301 = vadd.f32 0.0, %v1300
          %v1302 = vpop.f32.mrf.mxu0
          %1303 = vmatprep.mubr.bf16.mxu0 0
          %1304 = vmatmul.mubr.bf16.gmra.mxu0 %v1206
          %v1305 = vpop.f32.mrf.mxu0
          %v1306 = vadd.f32 0.0, %v1305
          %v1307 = vpop.f32.mrf.mxu0
          %v1308 = vpop.f32.mrf.mxu0
          %v1309 = vadd.f32 0.0, %v1308
          %v1310 = vpop.f32.mrf.mxu0
          %1311 = vdwg.mxu0
          %v1312 = vadd.f32 %v1135, %v1250
          %v1313 = vadd.f32 %v1136, %v1253
          %v1314 = vadd.f32 %v1137, %v1258
          %v1315 = vadd.f32 %v1138, %v1261
          %v1316 = vadd.f32 %v1139, %v1266
          %v1317 = vadd.f32 %v1140, %v1269
          %v1318 = vadd.f32 %v1141, %v1274
          %v1319 = vadd.f32 %v1142, %v1277
          %v1320 = vadd.f32 %v1143, %v1282
          %v1321 = vadd.f32 %v1144, %v1285
          %v1322 = vadd.f32 %v1145, %v1290
          %v1323 = vadd.f32 %v1146, %v1293
          %v1324 = vadd.f32 %v1147, %v1298
          %v1325 = vadd.f32 %v1148, %v1301
          %v1326 = vadd.f32 %v1149, %v1306
          %v1327 = vadd.f32 %v1150, %v1309
          %1328 = vst [vmem:[#allocation5] sm:$0xff] %v1312
          %1329 = vst [vmem:[#allocation5 + $0x8] sm:$0xff] %v1313
          %1330 = vst [vmem:[#allocation5 + $0x10] sm:$0xff] %v1314
          %1331 = vst [vmem:[#allocation5 + $0x18] sm:$0xff] %v1315
          %1332 = vst [vmem:[#allocation5 + $0x20] sm:$0xff] %v1316
          %1333 = vst [vmem:[#allocation5 + $0x28] sm:$0xff] %v1317
          %1334 = vst [vmem:[#allocation5 + $0x30] sm:$0xff] %v1318
          %1335 = vst [vmem:[#allocation5 + $0x38] sm:$0xff] %v1319
          %1336 = vst [vmem:[#allocation5 + $0x40] sm:$0xff] %v1320
          %1337 = vst [vmem:[#allocation5 + $0x48] sm:$0xff] %v1321
          %1338 = vst [vmem:[#allocation5 + $0x50] sm:$0xff] %v1322
          %1339 = vst [vmem:[#allocation5 + $0x58] sm:$0xff] %v1323
          %1340 = vst [vmem:[#allocation5 + $0x60] sm:$0xff] %v1324
          %1341 = vst [vmem:[#allocation5 + $0x68] sm:$0xff] %v1325
          %1342 = vst [vmem:[#allocation5 + $0x70] sm:$0xff] %v1326
          %1343 = vst [vmem:[#allocation5 + $0x78] sm:$0xff] %v1327
          // Predicated region
          $region85: #{tpu_custom_call.1} parent=79 // pred_check
            %p1344 = pneg %p434
          $region86: #{tpu_custom_call.1} parent=79 // pred_check_branch
            %1346 = sbr.rel (%p1344) target = $region88
          $region87: #{tpu_custom_call.1} parent=79 // pred_region
            %s1347 = scalar_lea.vmem [#allocation2], %s415
            %v1348 = vld [vmem:[%s1347] sm:$0xff]
            %v1349 = vld [vmem:[%s1347 + $0x8] sm:$0xff]
            %v1350 = vld [vmem:[%s1347 + $0x10] sm:$0xff]
            %v1351 = vld [vmem:[%s1347 + $0x18] sm:$0xff]
            %v1352 = vld [vmem:[%s1347 + $0x20] sm:$0xff]
            %v1353 = vld [vmem:[%s1347 + $0x28] sm:$0xff]
            %v1354 = vld [vmem:[%s1347 + $0x30] sm:$0xff]
            %v1355 = vld [vmem:[%s1347 + $0x38] sm:$0xff]
            %v1356 = vld [vmem:[%s1347 + $0x40] sm:$0xff]
            %v1357 = vld [vmem:[%s1347 + $0x48] sm:$0xff]
            %v1358 = vld [vmem:[%s1347 + $0x50] sm:$0xff]
            %v1359 = vld [vmem:[%s1347 + $0x58] sm:$0xff]
            %v1360 = vld [vmem:[%s1347 + $0x60] sm:$0xff]
            %v1361 = vld [vmem:[%s1347 + $0x68] sm:$0xff]
            %v1362 = vld [vmem:[%s1347 + $0x70] sm:$0xff]
            %v1363 = vld [vmem:[%s1347 + $0x78] sm:$0xff]
            %v1364 = vld [vmem:[#allocation5] sm:$0xff]
            %v1365 = vld [vmem:[#allocation5 + $0x8] sm:$0xff]
            %v1366 = vld [vmem:[#allocation5 + $0x10] sm:$0xff]
            %v1367 = vld [vmem:[#allocation5 + $0x18] sm:$0xff]
            %v1368 = vld [vmem:[#allocation5 + $0x20] sm:$0xff]
            %v1369 = vld [vmem:[#allocation5 + $0x28] sm:$0xff]
            %v1370 = vld [vmem:[#allocation5 + $0x30] sm:$0xff]
            %v1371 = vld [vmem:[#allocation5 + $0x38] sm:$0xff]
            %v1372 = vld [vmem:[#allocation5 + $0x40] sm:$0xff]
            %v1373 = vld [vmem:[#allocation5 + $0x48] sm:$0xff]
            %v1374 = vld [vmem:[#allocation5 + $0x50] sm:$0xff]
            %v1375 = vld [vmem:[#allocation5 + $0x58] sm:$0xff]
            %v1376 = vld [vmem:[#allocation5 + $0x60] sm:$0xff]
            %v1377 = vld [vmem:[#allocation5 + $0x68] sm:$0xff]
            %v1378 = vld [vmem:[#allocation5 + $0x70] sm:$0xff]
            %v1379 = vld [vmem:[#allocation5 + $0x78] sm:$0xff]
            %v1380 = vsub.f32 %v1348, %v1364
            %v1381 = vsub.f32 %v1349, %v1365
            %v1382 = vsub.f32 %v1350, %v1366
            %v1383 = vsub.f32 %v1351, %v1367
            %v1384 = vsub.f32 %v1352, %v1368
            %v1385 = vsub.f32 %v1353, %v1369
            %v1386 = vsub.f32 %v1354, %v1370
            %v1387 = vsub.f32 %v1355, %v1371
            %v1388 = vsub.f32 %v1356, %v1372
            %v1389 = vsub.f32 %v1357, %v1373
            %v1390 = vsub.f32 %v1358, %v1374
            %v1391 = vsub.f32 %v1359, %v1375
            %v1392 = vsub.f32 %v1360, %v1376
            %v1393 = vsub.f32 %v1361, %v1377
            %v1394 = vsub.f32 %v1362, %v1378
            %v1395 = vsub.f32 %v1363, %v1379
            %s1396 = scalar_lea.vmem [#allocation3], %s415
            %1397 = vst [vmem:[%s1396] sm:$0xff] %v1380
            %1398 = vst [vmem:[%s1396 + $0x8] sm:$0xff] %v1381
            %1399 = vst [vmem:[%s1396 + $0x10] sm:$0xff] %v1382
            %1400 = vst [vmem:[%s1396 + $0x18] sm:$0xff] %v1383
            %1401 = vst [vmem:[%s1396 + $0x20] sm:$0xff] %v1384
            %1402 = vst [vmem:[%s1396 + $0x28] sm:$0xff] %v1385
            %1403 = vst [vmem:[%s1396 + $0x30] sm:$0xff] %v1386
            %1404 = vst [vmem:[%s1396 + $0x38] sm:$0xff] %v1387
            %1405 = vst [vmem:[%s1396 + $0x40] sm:$0xff] %v1388
            %1406 = vst [vmem:[%s1396 + $0x48] sm:$0xff] %v1389
            %1407 = vst [vmem:[%s1396 + $0x50] sm:$0xff] %v1390
            %1408 = vst [vmem:[%s1396 + $0x58] sm:$0xff] %v1391
            %1409 = vst [vmem:[%s1396 + $0x60] sm:$0xff] %v1392
            %1410 = vst [vmem:[%s1396 + $0x68] sm:$0xff] %v1393
            %1411 = vst [vmem:[%s1396 + $0x70] sm:$0xff] %v1394
            %1412 = vst [vmem:[%s1396 + $0x78] sm:$0xff] %v1395
            %s1413 = scalar_lea.vmem [#allocation4], %s415
            %v1414 = vld [vmem:[%s1413] sm:$0xff]
            %v1415 = vld [vmem:[%s1413 + $0x8] sm:$0xff]
            %v1416 = vld [vmem:[%s1413 + $0x10] sm:$0xff]
            %v1417 = vld [vmem:[%s1413 + $0x18] sm:$0xff]
            %v1418 = vld [vmem:[%s1413 + $0x20] sm:$0xff]
            %v1419 = vld [vmem:[%s1413 + $0x28] sm:$0xff]
            %v1420 = vld [vmem:[%s1413 + $0x30] sm:$0xff]
            %v1421 = vld [vmem:[%s1413 + $0x38] sm:$0xff]
            %v1422 = vld [vmem:[%s1413 + $0x40] sm:$0xff]
            %v1423 = vld [vmem:[%s1413 + $0x48] sm:$0xff]
            %v1424 = vld [vmem:[%s1413 + $0x50] sm:$0xff]
            %v1425 = vld [vmem:[%s1413 + $0x58] sm:$0xff]
            %v1426 = vld [vmem:[%s1413 + $0x60] sm:$0xff]
            %v1427 = vld [vmem:[%s1413 + $0x68] sm:$0xff]
            %v1428 = vld [vmem:[%s1413 + $0x70] sm:$0xff]
            %v1429 = vld [vmem:[%s1413 + $0x78] sm:$0xff]
            %1430 = vmatprep.subr.mxu0 0.0
            %1431 = vmatpush1.msra.mxu0 %v432
            %1432 = vmatprep.subr.mxu0 0.0
            %1433 = vmatpush1.msra.mxu0 %v431
            %1434 = vmatprep.subr.mxu0 0.0
            %1435 = vmatpush1.msra.mxu0 %v430
            %1436 = vmatprep.subr.mxu0 0.0
            %1437 = vmatpush1.msra.mxu0 %v429
            %1438 = vmatprep.subr.mxu0 0.0
            %1439 = vmatpush1.msra.mxu0 %v428
            %1440 = vmatprep.subr.mxu0 0.0
            %1441 = vmatpush1.msra.mxu0 %v427
            %1442 = vmatprep.subr.mxu0 0.0
            %1443 = vmatpush1.msra.mxu0 %v426
            %1444 = vmatprep.subr.mxu0 0.0
            %1445 = vmatpush1.msra.mxu0 %v425
            %1446 = vmatprep.subr.mxu0 0.0
            %1447 = vmatpush1.msra.mxu0 %v424
            %1448 = vmatprep.subr.mxu0 0.0
            %1449 = vmatpush1.msra.mxu0 %v423
            %1450 = vmatprep.subr.mxu0 0.0
            %1451 = vmatpush1.msra.mxu0 %v422
            %1452 = vmatprep.subr.mxu0 0.0
            %1453 = vmatpush1.msra.mxu0 %v421
            %1454 = vmatprep.subr.mxu0 0.0
            %1455 = vmatpush1.msra.mxu0 %v420
            %1456 = vmatprep.subr.mxu0 0.0
            %1457 = vmatpush1.msra.mxu0 %v419
            %1458 = vmatprep.subr.mxu0 0.0
            %1459 = vmatpush1.msra.mxu0 %v418
            %1460 = vmatprep.subr.mxu0 0.0
            %1461 = vmatpush1.msra.mxu0 %v417
            %1462 = vmatprep.subr.mxu0 0.0
            %1463 = vmatpush2.msra.mxu0 0.0
            %1464 = vmatprep.subr.mxu0 0.0
            %1465 = vmatpush2.msra.mxu0 0.0
            %1466 = vmatprep.subr.mxu0 0.0
            %1467 = vmatpush2.msra.mxu0 0.0
            %1468 = vmatprep.subr.mxu0 0.0
            %1469 = vmatpush2.msra.mxu0 0.0
            %1470 = vmatprep.subr.mxu0 0.0
            %1471 = vmatpush2.msra.mxu0 0.0
            %1472 = vmatprep.subr.mxu0 0.0
            %1473 = vmatpush2.msra.mxu0 0.0
            %1474 = vmatprep.subr.mxu0 0.0
            %1475 = vmatpush2.msra.mxu0 0.0
            %1476 = vmatprep.subr.mxu0 0.0
            %1477 = vmatpush2.msra.mxu0 0.0
            %1478 = vmatprep.subr.mxu0 0.0
            %1479 = vmatpush2.msra.mxu0 0.0
            %1480 = vmatprep.subr.mxu0 0.0
            %1481 = vmatpush2.msra.mxu0 0.0
            %1482 = vmatprep.subr.mxu0 0.0
            %1483 = vmatpush2.msra.mxu0 0.0
            %1484 = vmatprep.subr.mxu0 0.0
            %1485 = vmatpush2.msra.mxu0 0.0
            %1486 = vmatprep.subr.mxu0 0.0
            %1487 = vmatpush2.msra.mxu0 0.0
            %1488 = vmatprep.subr.mxu0 0.0
            %1489 = vmatpush2.msra.mxu0 0.0
            %1490 = vmatprep.subr.mxu0 0.0
            %1491 = vmatpush2.msra.mxu0 0.0
            %1492 = vmatprep.subr.mxu0 0.0
            %1493 = vmatpush2.msra.mxu0 0.0
            %1494 = vmatprep.mubr.f32.mxu0 0.0
            %1495 = vmatmul.mubr.f32.gmra.mxu0 %v1380
            %v1496 = vpop.f32.mrf.mxu0
            %v1497 = vadd.f32 0.0, %v1496
            %v1498 = vpop.f32.mrf.mxu0
            %1499 = vmatprep.mubr.f32.mxu0 0.0
            %1500 = vmatmul.mubr.f32.gmra.mxu0 %v1381
            %v1501 = vpop.f32.mrf.mxu0
            %v1502 = vadd.f32 0.0, %v1501
            %v1503 = vpop.f32.mrf.mxu0
            %1504 = vmatprep.mubr.f32.mxu0 0.0
            %1505 = vmatmul.mubr.f32.gmra.mxu0 %v1382
            %v1506 = vpop.f32.mrf.mxu0
            %v1507 = vadd.f32 0.0, %v1506
            %v1508 = vpop.f32.mrf.mxu0
            %1509 = vmatprep.mubr.f32.mxu0 0.0
            %1510 = vmatmul.mubr.f32.gmra.mxu0 %v1383
            %v1511 = vpop.f32.mrf.mxu0
            %v1512 = vadd.f32 0.0, %v1511
            %v1513 = vpop.f32.mrf.mxu0
            %1514 = vmatprep.mubr.f32.mxu0 0.0
            %1515 = vmatmul.mubr.f32.gmra.mxu0 %v1384
            %v1516 = vpop.f32.mrf.mxu0
            %v1517 = vadd.f32 0.0, %v1516
            %v1518 = vpop.f32.mrf.mxu0
            %1519 = vmatprep.mubr.f32.mxu0 0.0
            %1520 = vmatmul.mubr.f32.gmra.mxu0 %v1385
            %v1521 = vpop.f32.mrf.mxu0
            %v1522 = vadd.f32 0.0, %v1521
            %v1523 = vpop.f32.mrf.mxu0
            %1524 = vmatprep.mubr.f32.mxu0 0.0
            %1525 = vmatmul.mubr.f32.gmra.mxu0 %v1386
            %v1526 = vpop.f32.mrf.mxu0
            %v1527 = vadd.f32 0.0, %v1526
            %v1528 = vpop.f32.mrf.mxu0
            %1529 = vmatprep.mubr.f32.mxu0 0.0
            %1530 = vmatmul.mubr.f32.gmra.mxu0 %v1387
            %v1531 = vpop.f32.mrf.mxu0
            %v1532 = vadd.f32 0.0, %v1531
            %v1533 = vpop.f32.mrf.mxu0
            %1534 = vmatprep.mubr.f32.mxu0 0.0
            %1535 = vmatmul.mubr.f32.gmra.mxu0 %v1388
            %v1536 = vpop.f32.mrf.mxu0
            %v1537 = vadd.f32 0.0, %v1536
            %v1538 = vpop.f32.mrf.mxu0
            %1539 = vmatprep.mubr.f32.mxu0 0.0
            %1540 = vmatmul.mubr.f32.gmra.mxu0 %v1389
            %v1541 = vpop.f32.mrf.mxu0
            %v1542 = vadd.f32 0.0, %v1541
            %v1543 = vpop.f32.mrf.mxu0
            %1544 = vmatprep.mubr.f32.mxu0 0.0
            %1545 = vmatmul.mubr.f32.gmra.mxu0 %v1390
            %v1546 = vpop.f32.mrf.mxu0
            %v1547 = vadd.f32 0.0, %v1546
            %v1548 = vpop.f32.mrf.mxu0
            %1549 = vmatprep.mubr.f32.mxu0 0.0
            %1550 = vmatmul.mubr.f32.gmra.mxu0 %v1391
            %v1551 = vpop.f32.mrf.mxu0
            %v1552 = vadd.f32 0.0, %v1551
            %v1553 = vpop.f32.mrf.mxu0
            %1554 = vmatprep.mubr.f32.mxu0 0.0
            %1555 = vmatmul.mubr.f32.gmra.mxu0 %v1392
            %v1556 = vpop.f32.mrf.mxu0
            %v1557 = vadd.f32 0.0, %v1556
            %v1558 = vpop.f32.mrf.mxu0
            %1559 = vmatprep.mubr.f32.mxu0 0.0
            %1560 = vmatmul.mubr.f32.gmra.mxu0 %v1393
            %v1561 = vpop.f32.mrf.mxu0
            %v1562 = vadd.f32 0.0, %v1561
            %v1563 = vpop.f32.mrf.mxu0
            %1564 = vmatprep.mubr.f32.mxu0 0.0
            %1565 = vmatmul.mubr.f32.gmra.mxu0 %v1394
            %v1566 = vpop.f32.mrf.mxu0
            %v1567 = vadd.f32 0.0, %v1566
            %v1568 = vpop.f32.mrf.mxu0
            %1569 = vmatprep.mubr.f32.mxu0 0.0
            %1570 = vmatmul.mubr.f32.gmra.mxu0 %v1395
            %v1571 = vpop.f32.mrf.mxu0
            %v1572 = vadd.f32 0.0, %v1571
            %v1573 = vpop.f32.mrf.mxu0
            %1574 = vdwg.mxu0
            %v1575 = vadd.f32 %v1414, %v1497
            %v1576 = vadd.f32 %v1415, %v1502
            %v1577 = vadd.f32 %v1416, %v1507
            %v1578 = vadd.f32 %v1417, %v1512
            %v1579 = vadd.f32 %v1418, %v1517
            %v1580 = vadd.f32 %v1419, %v1522
            %v1581 = vadd.f32 %v1420, %v1527
            %v1582 = vadd.f32 %v1421, %v1532
            %v1583 = vadd.f32 %v1422, %v1537
            %v1584 = vadd.f32 %v1423, %v1542
            %v1585 = vadd.f32 %v1424, %v1547
            %v1586 = vadd.f32 %v1425, %v1552
            %v1587 = vadd.f32 %v1426, %v1557
            %v1588 = vadd.f32 %v1427, %v1562
            %v1589 = vadd.f32 %v1428, %v1567
            %v1590 = vadd.f32 %v1429, %v1572
            %1591 = vst [vmem:[%s1413] sm:$0xff] %v1575
            %1592 = vst [vmem:[%s1413 + $0x8] sm:$0xff] %v1576
            %1593 = vst [vmem:[%s1413 + $0x10] sm:$0xff] %v1577
            %1594 = vst [vmem:[%s1413 + $0x18] sm:$0xff] %v1578
            %1595 = vst [vmem:[%s1413 + $0x20] sm:$0xff] %v1579
            %1596 = vst [vmem:[%s1413 + $0x28] sm:$0xff] %v1580
            %1597 = vst [vmem:[%s1413 + $0x30] sm:$0xff] %v1581
            %1598 = vst [vmem:[%s1413 + $0x38] sm:$0xff] %v1582
            %1599 = vst [vmem:[%s1413 + $0x40] sm:$0xff] %v1583
            %1600 = vst [vmem:[%s1413 + $0x48] sm:$0xff] %v1584
            %1601 = vst [vmem:[%s1413 + $0x50] sm:$0xff] %v1585
            %1602 = vst [vmem:[%s1413 + $0x58] sm:$0xff] %v1586
            %1603 = vst [vmem:[%s1413 + $0x60] sm:$0xff] %v1587
            %1604 = vst [vmem:[%s1413 + $0x68] sm:$0xff] %v1588
            %1605 = vst [vmem:[%s1413 + $0x70] sm:$0xff] %v1589
            %1606 = vst [vmem:[%s1413 + $0x78] sm:$0xff] %v1590
            %v1607 = vld [vmem:[%s1413] sm:$0xff]
            %v1608 = vld [vmem:[%s1413 + $0x8] sm:$0xff]
            %v1609 = vld [vmem:[%s1413 + $0x10] sm:$0xff]
            %v1610 = vld [vmem:[%s1413 + $0x18] sm:$0xff]
            %v1611 = vld [vmem:[%s1413 + $0x20] sm:$0xff]
            %v1612 = vld [vmem:[%s1413 + $0x28] sm:$0xff]
            %v1613 = vld [vmem:[%s1413 + $0x30] sm:$0xff]
            %v1614 = vld [vmem:[%s1413 + $0x38] sm:$0xff]
            %v1615 = vld [vmem:[%s1413 + $0x40] sm:$0xff]
            %v1616 = vld [vmem:[%s1413 + $0x48] sm:$0xff]
            %v1617 = vld [vmem:[%s1413 + $0x50] sm:$0xff]
            %v1618 = vld [vmem:[%s1413 + $0x58] sm:$0xff]
            %v1619 = vld [vmem:[%s1413 + $0x60] sm:$0xff]
            %v1620 = vld [vmem:[%s1413 + $0x68] sm:$0xff]
            %v1621 = vld [vmem:[%s1413 + $0x70] sm:$0xff]
            %v1622 = vld [vmem:[%s1413 + $0x78] sm:$0xff]
            %v1623 = vld [vmem:[%s7] sm:$0x1]
            %v1625 = vlaneseq
            %v1626 = vshrl.u32 %v1625, 7
            %v1627 = vsub.s32 0, %v1626
            %v1628 = vrot.slane %v1623, %v1627
            %v1630 = vadd.f32 %v1607, %v1628
            %v1631 = vadd.f32 %v1608, %v1628
            %v1632 = vadd.f32 %v1609, %v1628
            %v1633 = vadd.f32 %v1610, %v1628
            %v1634 = vadd.f32 %v1611, %v1628
            %v1635 = vadd.f32 %v1612, %v1628
            %v1636 = vadd.f32 %v1613, %v1628
            %v1637 = vadd.f32 %v1614, %v1628
            %v1638 = vadd.f32 %v1615, %v1628
            %v1639 = vadd.f32 %v1616, %v1628
            %v1640 = vadd.f32 %v1617, %v1628
            %v1641 = vadd.f32 %v1618, %v1628
            %v1642 = vadd.f32 %v1619, %v1628
            %v1643 = vadd.f32 %v1620, %v1628
            %v1644 = vadd.f32 %v1621, %v1628
            %v1645 = vadd.f32 %v1622, %v1628
            %v1646 = vmax.f32 %v1630, 0.0
            %v1647 = vmax.f32 %v1631, 0.0
            %v1648 = vmax.f32 %v1632, 0.0
            %v1649 = vmax.f32 %v1633, 0.0
            %v1650 = vmax.f32 %v1634, 0.0
            %v1651 = vmax.f32 %v1635, 0.0
            %v1652 = vmax.f32 %v1636, 0.0
            %v1653 = vmax.f32 %v1637, 0.0
            %v1654 = vmax.f32 %v1638, 0.0
            %v1655 = vmax.f32 %v1639, 0.0
            %v1656 = vmax.f32 %v1640, 0.0
            %v1657 = vmax.f32 %v1641, 0.0
            %v1658 = vmax.f32 %v1642, 0.0
            %v1659 = vmax.f32 %v1643, 0.0
            %v1660 = vmax.f32 %v1644, 0.0
            %v1661 = vmax.f32 %v1645, 0.0
            %1662 = vst [vmem:[#allocation15] sm:$0xff] %v1646
            %1663 = vst [vmem:[#allocation15 + $0x8] sm:$0xff] %v1647
            %1664 = vst [vmem:[#allocation15 + $0x10] sm:$0xff] %v1648
            %1665 = vst [vmem:[#allocation15 + $0x18] sm:$0xff] %v1649
            %1666 = vst [vmem:[#allocation15 + $0x20] sm:$0xff] %v1650
            %1667 = vst [vmem:[#allocation15 + $0x28] sm:$0xff] %v1651
            %1668 = vst [vmem:[#allocation15 + $0x30] sm:$0xff] %v1652
            %1669 = vst [vmem:[#allocation15 + $0x38] sm:$0xff] %v1653
            %1670 = vst [vmem:[#allocation15 + $0x40] sm:$0xff] %v1654
            %1671 = vst [vmem:[#allocation15 + $0x48] sm:$0xff] %v1655
            %1672 = vst [vmem:[#allocation15 + $0x50] sm:$0xff] %v1656
            %1673 = vst [vmem:[#allocation15 + $0x58] sm:$0xff] %v1657
            %1674 = vst [vmem:[#allocation15 + $0x60] sm:$0xff] %v1658
            %1675 = vst [vmem:[#allocation15 + $0x68] sm:$0xff] %v1659
            %1676 = vst [vmem:[#allocation15 + $0x70] sm:$0xff] %v1660
            %1677 = vst [vmem:[#allocation15 + $0x78] sm:$0xff] %v1661
          $region88: #{tpu_custom_call.1} parent=79 // pred_fallthru
            _
        $region80: #{tpu_custom_call.1} parent=51 // pred_fallthru
          _
        %p1678 = scmp.eq.s32.totalorder %s1085, 0
        %p1679 = pnand %p1073, %p1678
        %p1680 = pneg %p1679
        // Predicated region
        $region89: #{tpu_custom_call.1} parent=51 // pred_check
          _
        $region90: #{tpu_custom_call.1} parent=51 // pred_check_branch
          %1682 = sbr.rel (%p1679) target = $region92
        $region91: #{tpu_custom_call.1} parent=51 // pred_region
          // Predicated region
          $region93: #{tpu_custom_call.1} parent=91 // pred_check
            %p1683 = pneg %p434
          $region94: #{tpu_custom_call.1} parent=91 // pred_check_branch
            %1685 = sbr.rel (%p1683) target = $region96
          $region95: #{tpu_custom_call.1} parent=91 // pred_region
            %1686 = vst [vmem:[#allocation5] sm:$0xff] 0.0
            %1687 = vst [vmem:[#allocation5 + $0x8] sm:$0xff] 0.0
            %1688 = vst [vmem:[#allocation5 + $0x10] sm:$0xff] 0.0
            %1689 = vst [vmem:[#allocation5 + $0x18] sm:$0xff] 0.0
            %1690 = vst [vmem:[#allocation5 + $0x20] sm:$0xff] 0.0
            %1691 = vst [vmem:[#allocation5 + $0x28] sm:$0xff] 0.0
            %1692 = vst [vmem:[#allocation5 + $0x30] sm:$0xff] 0.0
            %1693 = vst [vmem:[#allocation5 + $0x38] sm:$0xff] 0.0
            %1694 = vst [vmem:[#allocation5 + $0x40] sm:$0xff] 0.0
            %1695 = vst [vmem:[#allocation5 + $0x48] sm:$0xff] 0.0
            %1696 = vst [vmem:[#allocation5 + $0x50] sm:$0xff] 0.0
            %1697 = vst [vmem:[#allocation5 + $0x58] sm:$0xff] 0.0
            %1698 = vst [vmem:[#allocation5 + $0x60] sm:$0xff] 0.0
            %1699 = vst [vmem:[#allocation5 + $0x68] sm:$0xff] 0.0
            %1700 = vst [vmem:[#allocation5 + $0x70] sm:$0xff] 0.0
            %1701 = vst [vmem:[#allocation5 + $0x78] sm:$0xff] 0.0
          $region96: #{tpu_custom_call.1} parent=91 // pred_fallthru
            _
          %s1702 = scalar_lea.vmem [#allocation3], %s416
          %v1703 = vld [vmem:[%s1702] sm:$0xff]
          %v1704 = vld [vmem:[%s1702 + $0x8] sm:$0xff]
          %v1705 = vld [vmem:[%s1702 + $0x10] sm:$0xff]
          %v1706 = vld [vmem:[%s1702 + $0x18] sm:$0xff]
          %v1707 = vld [vmem:[%s1702 + $0x20] sm:$0xff]
          %v1708 = vld [vmem:[%s1702 + $0x28] sm:$0xff]
          %v1709 = vld [vmem:[%s1702 + $0x30] sm:$0xff]
          %v1710 = vld [vmem:[%s1702 + $0x38] sm:$0xff]
          %v1711 = vld [vmem:[%s1702 + $0x40] sm:$0xff]
          %v1712 = vld [vmem:[%s1702 + $0x48] sm:$0xff]
          %v1713 = vld [vmem:[%s1702 + $0x50] sm:$0xff]
          %v1714 = vld [vmem:[%s1702 + $0x58] sm:$0xff]
          %v1715 = vld [vmem:[%s1702 + $0x60] sm:$0xff]
          %v1716 = vld [vmem:[%s1702 + $0x68] sm:$0xff]
          %v1717 = vld [vmem:[%s1702 + $0x70] sm:$0xff]
          %v1718 = vld [vmem:[%s1702 + $0x78] sm:$0xff]
          %v1719 = vpack.c.bf16 %v1704, %v1703
          %v1720 = vpack.c.bf16 %v1706, %v1705
          %v1721 = vpack.c.bf16 %v1708, %v1707
          %v1722 = vpack.c.bf16 %v1710, %v1709
          %v1723 = vpack.c.bf16 %v1712, %v1711
          %v1724 = vpack.c.bf16 %v1714, %v1713
          %v1725 = vpack.c.bf16 %v1716, %v1715
          %v1726 = vpack.c.bf16 %v1718, %v1717
          %v1727 = vld [vmem:[#allocation5] sm:$0xff]
          %v1728 = vld [vmem:[#allocation5 + $0x8] sm:$0xff]
          %v1729 = vld [vmem:[#allocation5 + $0x10] sm:$0xff]
          %v1730 = vld [vmem:[#allocation5 + $0x18] sm:$0xff]
          %v1731 = vld [vmem:[#allocation5 + $0x20] sm:$0xff]
          %v1732 = vld [vmem:[#allocation5 + $0x28] sm:$0xff]
          %v1733 = vld [vmem:[#allocation5 + $0x30] sm:$0xff]
          %v1734 = vld [vmem:[#allocation5 + $0x38] sm:$0xff]
          %v1735 = vld [vmem:[#allocation5 + $0x40] sm:$0xff]
          %v1736 = vld [vmem:[#allocation5 + $0x48] sm:$0xff]
          %v1737 = vld [vmem:[#allocation5 + $0x50] sm:$0xff]
          %v1738 = vld [vmem:[#allocation5 + $0x58] sm:$0xff]
          %v1739 = vld [vmem:[#allocation5 + $0x60] sm:$0xff]
          %v1740 = vld [vmem:[#allocation5 + $0x68] sm:$0xff]
          %v1741 = vld [vmem:[#allocation5 + $0x70] sm:$0xff]
          %v1742 = vld [vmem:[#allocation5 + $0x78] sm:$0xff]
          %v1743 = vld [vmem:[#allocation9] sm:$0xf]
          %v1744 = vld [vmem:[#allocation9 + $0x4] sm:$0xf]
          %v1745 = vld [vmem:[#allocation9 + $0x8] sm:$0xf]
          %v1746 = vld [vmem:[#allocation9 + $0xc] sm:$0xf]
          %v1747 = vld [vmem:[#allocation9 + $0x10] sm:$0xf]
          %v1748 = vld [vmem:[#allocation9 + $0x14] sm:$0xf]
          %v1749 = vld [vmem:[#allocation9 + $0x18] sm:$0xf]
          %v1750 = vld [vmem:[#allocation9 + $0x1c] sm:$0xf]
          %v1751 = vld [vmem:[#allocation9 + $0x20] sm:$0xf]
          %v1752 = vld [vmem:[#allocation9 + $0x24] sm:$0xf]
          %v1753 = vld [vmem:[#allocation9 + $0x28] sm:$0xf]
          %v1754 = vld [vmem:[#allocation9 + $0x2c] sm:$0xf]
          %v1755 = vld [vmem:[#allocation9 + $0x30] sm:$0xf]
          %v1756 = vld [vmem:[#allocation9 + $0x34] sm:$0xf]
          %v1757 = vld [vmem:[#allocation9 + $0x38] sm:$0xf]
          %v1758 = vld [vmem:[#allocation9 + $0x3c] sm:$0xf]
          %v1775 = vunpack.c.l.b16 %v1743
          %v1776 = vunpack.c.l.b16 %v1744
          %v1777 = vunpack.c.l.b16 %v1745
          %v1778 = vunpack.c.l.b16 %v1746
          %v1779 = vunpack.c.l.b16 %v1747
          %v1780 = vunpack.c.l.b16 %v1748
          %v1781 = vunpack.c.l.b16 %v1749
          %v1782 = vunpack.c.l.b16 %v1750
          %v1783 = vunpack.c.l.b16 %v1751
          %v1784 = vunpack.c.l.b16 %v1752
          %v1785 = vunpack.c.l.b16 %v1753
          %v1786 = vunpack.c.l.b16 %v1754
          %v1787 = vunpack.c.l.b16 %v1755
          %v1788 = vunpack.c.l.b16 %v1756
          %v1789 = vunpack.c.l.b16 %v1757
          %v1790 = vunpack.c.l.b16 %v1758
          %v1791 = vpack.c.b16 %v1776, %v1775
          %v1792 = vpack.c.b16 %v1778, %v1777
          %v1793 = vpack.c.b16 %v1780, %v1779
          %v1794 = vpack.c.b16 %v1782, %v1781
          %v1795 = vpack.c.b16 %v1784, %v1783
          %v1796 = vpack.c.b16 %v1786, %v1785
          %v1797 = vpack.c.b16 %v1788, %v1787
          %v1798 = vpack.c.b16 %v1790, %v1789
          %1807 = vmatprep.subr.bf16.mxu0 0
          %1808 = vmatpush1.bf16.msra.mxu0 %v1726
          %1809 = vmatprep.subr.bf16.mxu0 0
          %1810 = vmatpush1.bf16.msra.mxu0 %v1725
          %1811 = vmatprep.subr.bf16.mxu0 0
          %1812 = vmatpush1.bf16.msra.mxu0 %v1724
          %1813 = vmatprep.subr.bf16.mxu0 0
          %1814 = vmatpush1.bf16.msra.mxu0 %v1723
          %1815 = vmatprep.subr.bf16.mxu0 0
          %1816 = vmatpush1.bf16.msra.mxu0 %v1722
          %1817 = vmatprep.subr.bf16.mxu0 0
          %1818 = vmatpush1.bf16.msra.mxu0 %v1721
          %1819 = vmatprep.subr.bf16.mxu0 0
          %1820 = vmatpush1.bf16.msra.mxu0 %v1720
          %1821 = vmatprep.subr.bf16.mxu0 0
          %1822 = vmatpush1.bf16.msra.mxu0 %v1719
          %1823 = vmatprep.subr.bf16.mxu0 0
          %1824 = vmatpush2.bf16.msra.mxu0 0
          %1825 = vmatprep.subr.bf16.mxu0 0
          %1826 = vmatpush2.bf16.msra.mxu0 0
          %1827 = vmatprep.subr.bf16.mxu0 0
          %1828 = vmatpush2.bf16.msra.mxu0 0
          %1829 = vmatprep.subr.bf16.mxu0 0
          %1830 = vmatpush2.bf16.msra.mxu0 0
          %1831 = vmatprep.subr.bf16.mxu0 0
          %1832 = vmatpush2.bf16.msra.mxu0 0
          %1833 = vmatprep.subr.bf16.mxu0 0
          %1834 = vmatpush2.bf16.msra.mxu0 0
          %1835 = vmatprep.subr.bf16.mxu0 0
          %1836 = vmatpush2.bf16.msra.mxu0 0
          %1837 = vmatprep.subr.bf16.mxu0 0
          %1838 = vmatpush2.bf16.msra.mxu0 0
          %1839 = vmatprep.mubr.bf16.mxu0 0
          %1840 = vmatmul.mubr.bf16.gmra.mxu0 %v1791
          %v1841 = vpop.f32.mrf.mxu0
          %v1842 = vadd.f32 0.0, %v1841
          %v1843 = vpop.f32.mrf.mxu0
          %v1844 = vpop.f32.mrf.mxu0
          %v1845 = vadd.f32 0.0, %v1844
          %v1846 = vpop.f32.mrf.mxu0
          %1847 = vmatprep.mubr.bf16.mxu0 0
          %1848 = vmatmul.mubr.bf16.gmra.mxu0 %v1792
          %v1849 = vpop.f32.mrf.mxu0
          %v1850 = vadd.f32 0.0, %v1849
          %v1851 = vpop.f32.mrf.mxu0
          %v1852 = vpop.f32.mrf.mxu0
          %v1853 = vadd.f32 0.0, %v1852
          %v1854 = vpop.f32.mrf.mxu0
          %1855 = vmatprep.mubr.bf16.mxu0 0
          %1856 = vmatmul.mubr.bf16.gmra.mxu0 %v1793
          %v1857 = vpop.f32.mrf.mxu0
          %v1858 = vadd.f32 0.0, %v1857
          %v1859 = vpop.f32.mrf.mxu0
          %v1860 = vpop.f32.mrf.mxu0
          %v1861 = vadd.f32 0.0, %v1860
          %v1862 = vpop.f32.mrf.mxu0
          %1863 = vmatprep.mubr.bf16.mxu0 0
          %1864 = vmatmul.mubr.bf16.gmra.mxu0 %v1794
          %v1865 = vpop.f32.mrf.mxu0
          %v1866 = vadd.f32 0.0, %v1865
          %v1867 = vpop.f32.mrf.mxu0
          %v1868 = vpop.f32.mrf.mxu0
          %v1869 = vadd.f32 0.0, %v1868
          %v1870 = vpop.f32.mrf.mxu0
          %1871 = vmatprep.mubr.bf16.mxu0 0
          %1872 = vmatmul.mubr.bf16.gmra.mxu0 %v1795
          %v1873 = vpop.f32.mrf.mxu0
          %v1874 = vadd.f32 0.0, %v1873
          %v1875 = vpop.f32.mrf.mxu0
          %v1876 = vpop.f32.mrf.mxu0
          %v1877 = vadd.f32 0.0, %v1876
          %v1878 = vpop.f32.mrf.mxu0
          %1879 = vmatprep.mubr.bf16.mxu0 0
          %1880 = vmatmul.mubr.bf16.gmra.mxu0 %v1796
          %v1881 = vpop.f32.mrf.mxu0
          %v1882 = vadd.f32 0.0, %v1881
          %v1883 = vpop.f32.mrf.mxu0
          %v1884 = vpop.f32.mrf.mxu0
          %v1885 = vadd.f32 0.0, %v1884
          %v1886 = vpop.f32.mrf.mxu0
          %1887 = vmatprep.mubr.bf16.mxu0 0
          %1888 = vmatmul.mubr.bf16.gmra.mxu0 %v1797
          %v1889 = vpop.f32.mrf.mxu0
          %v1890 = vadd.f32 0.0, %v1889
          %v1891 = vpop.f32.mrf.mxu0
          %v1892 = vpop.f32.mrf.mxu0
          %v1893 = vadd.f32 0.0, %v1892
          %v1894 = vpop.f32.mrf.mxu0
          %1895 = vmatprep.mubr.bf16.mxu0 0
          %1896 = vmatmul.mubr.bf16.gmra.mxu0 %v1798
          %v1897 = vpop.f32.mrf.mxu0
          %v1898 = vadd.f32 0.0, %v1897
          %v1899 = vpop.f32.mrf.mxu0
          %v1900 = vpop.f32.mrf.mxu0
          %v1901 = vadd.f32 0.0, %v1900
          %v1902 = vpop.f32.mrf.mxu0
          %1903 = vdwg.mxu0
          %v1904 = vadd.f32 %v1727, %v1842
          %v1905 = vadd.f32 %v1728, %v1845
          %v1906 = vadd.f32 %v1729, %v1850
          %v1907 = vadd.f32 %v1730, %v1853
          %v1908 = vadd.f32 %v1731, %v1858
          %v1909 = vadd.f32 %v1732, %v1861
          %v1910 = vadd.f32 %v1733, %v1866
          %v1911 = vadd.f32 %v1734, %v1869
          %v1912 = vadd.f32 %v1735, %v1874
          %v1913 = vadd.f32 %v1736, %v1877
          %v1914 = vadd.f32 %v1737, %v1882
          %v1915 = vadd.f32 %v1738, %v1885
          %v1916 = vadd.f32 %v1739, %v1890
          %v1917 = vadd.f32 %v1740, %v1893
          %v1918 = vadd.f32 %v1741, %v1898
          %v1919 = vadd.f32 %v1742, %v1901
          %1920 = vst [vmem:[#allocation5] sm:$0xff] %v1904
          %1921 = vst [vmem:[#allocation5 + $0x8] sm:$0xff] %v1905
          %1922 = vst [vmem:[#allocation5 + $0x10] sm:$0xff] %v1906
          %1923 = vst [vmem:[#allocation5 + $0x18] sm:$0xff] %v1907
          %1924 = vst [vmem:[#allocation5 + $0x20] sm:$0xff] %v1908
          %1925 = vst [vmem:[#allocation5 + $0x28] sm:$0xff] %v1909
          %1926 = vst [vmem:[#allocation5 + $0x30] sm:$0xff] %v1910
          %1927 = vst [vmem:[#allocation5 + $0x38] sm:$0xff] %v1911
          %1928 = vst [vmem:[#allocation5 + $0x40] sm:$0xff] %v1912
          %1929 = vst [vmem:[#allocation5 + $0x48] sm:$0xff] %v1913
          %1930 = vst [vmem:[#allocation5 + $0x50] sm:$0xff] %v1914
          %1931 = vst [vmem:[#allocation5 + $0x58] sm:$0xff] %v1915
          %1932 = vst [vmem:[#allocation5 + $0x60] sm:$0xff] %v1916
          %1933 = vst [vmem:[#allocation5 + $0x68] sm:$0xff] %v1917
          %1934 = vst [vmem:[#allocation5 + $0x70] sm:$0xff] %v1918
          %1935 = vst [vmem:[#allocation5 + $0x78] sm:$0xff] %v1919
          // Predicated region
          $region97: #{tpu_custom_call.1} parent=91 // pred_check
            %p1936 = pneg %p434
          $region98: #{tpu_custom_call.1} parent=91 // pred_check_branch
            %1938 = sbr.rel (%p1936) target = $region100
          $region99: #{tpu_custom_call.1} parent=91 // pred_region
            %s1939 = scalar_lea.vmem [#allocation3], %s415
            %v1940 = vld [vmem:[%s1939] sm:$0xff]
            %v1941 = vld [vmem:[%s1939 + $0x8] sm:$0xff]
            %v1942 = vld [vmem:[%s1939 + $0x10] sm:$0xff]
            %v1943 = vld [vmem:[%s1939 + $0x18] sm:$0xff]
            %v1944 = vld [vmem:[%s1939 + $0x20] sm:$0xff]
            %v1945 = vld [vmem:[%s1939 + $0x28] sm:$0xff]
            %v1946 = vld [vmem:[%s1939 + $0x30] sm:$0xff]
            %v1947 = vld [vmem:[%s1939 + $0x38] sm:$0xff]
            %v1948 = vld [vmem:[%s1939 + $0x40] sm:$0xff]
            %v1949 = vld [vmem:[%s1939 + $0x48] sm:$0xff]
            %v1950 = vld [vmem:[%s1939 + $0x50] sm:$0xff]
            %v1951 = vld [vmem:[%s1939 + $0x58] sm:$0xff]
            %v1952 = vld [vmem:[%s1939 + $0x60] sm:$0xff]
            %v1953 = vld [vmem:[%s1939 + $0x68] sm:$0xff]
            %v1954 = vld [vmem:[%s1939 + $0x70] sm:$0xff]
            %v1955 = vld [vmem:[%s1939 + $0x78] sm:$0xff]
            %v1956 = vld [vmem:[#allocation5] sm:$0xff]
            %v1957 = vld [vmem:[#allocation5 + $0x8] sm:$0xff]
            %v1958 = vld [vmem:[#allocation5 + $0x10] sm:$0xff]
            %v1959 = vld [vmem:[#allocation5 + $0x18] sm:$0xff]
            %v1960 = vld [vmem:[#allocation5 + $0x20] sm:$0xff]
            %v1961 = vld [vmem:[#allocation5 + $0x28] sm:$0xff]
            %v1962 = vld [vmem:[#allocation5 + $0x30] sm:$0xff]
            %v1963 = vld [vmem:[#allocation5 + $0x38] sm:$0xff]
            %v1964 = vld [vmem:[#allocation5 + $0x40] sm:$0xff]
            %v1965 = vld [vmem:[#allocation5 + $0x48] sm:$0xff]
            %v1966 = vld [vmem:[#allocation5 + $0x50] sm:$0xff]
            %v1967 = vld [vmem:[#allocation5 + $0x58] sm:$0xff]
            %v1968 = vld [vmem:[#allocation5 + $0x60] sm:$0xff]
            %v1969 = vld [vmem:[#allocation5 + $0x68] sm:$0xff]
            %v1970 = vld [vmem:[#allocation5 + $0x70] sm:$0xff]
            %v1971 = vld [vmem:[#allocation5 + $0x78] sm:$0xff]
            %v1972 = vsub.f32 %v1940, %v1956
            %v1973 = vsub.f32 %v1941, %v1957
            %v1974 = vsub.f32 %v1942, %v1958
            %v1975 = vsub.f32 %v1943, %v1959
            %v1976 = vsub.f32 %v1944, %v1960
            %v1977 = vsub.f32 %v1945, %v1961
            %v1978 = vsub.f32 %v1946, %v1962
            %v1979 = vsub.f32 %v1947, %v1963
            %v1980 = vsub.f32 %v1948, %v1964
            %v1981 = vsub.f32 %v1949, %v1965
            %v1982 = vsub.f32 %v1950, %v1966
            %v1983 = vsub.f32 %v1951, %v1967
            %v1984 = vsub.f32 %v1952, %v1968
            %v1985 = vsub.f32 %v1953, %v1969
            %v1986 = vsub.f32 %v1954, %v1970
            %v1987 = vsub.f32 %v1955, %v1971
            %s1988 = scalar_lea.vmem [#allocation2], %s415
            %1989 = vst [vmem:[%s1988] sm:$0xff] %v1972
            %1990 = vst [vmem:[%s1988 + $0x8] sm:$0xff] %v1973
            %1991 = vst [vmem:[%s1988 + $0x10] sm:$0xff] %v1974
            %1992 = vst [vmem:[%s1988 + $0x18] sm:$0xff] %v1975
            %1993 = vst [vmem:[%s1988 + $0x20] sm:$0xff] %v1976
            %1994 = vst [vmem:[%s1988 + $0x28] sm:$0xff] %v1977
            %1995 = vst [vmem:[%s1988 + $0x30] sm:$0xff] %v1978
            %1996 = vst [vmem:[%s1988 + $0x38] sm:$0xff] %v1979
            %1997 = vst [vmem:[%s1988 + $0x40] sm:$0xff] %v1980
            %1998 = vst [vmem:[%s1988 + $0x48] sm:$0xff] %v1981
            %1999 = vst [vmem:[%s1988 + $0x50] sm:$0xff] %v1982
            %2000 = vst [vmem:[%s1988 + $0x58] sm:$0xff] %v1983
            %2001 = vst [vmem:[%s1988 + $0x60] sm:$0xff] %v1984
            %2002 = vst [vmem:[%s1988 + $0x68] sm:$0xff] %v1985
            %2003 = vst [vmem:[%s1988 + $0x70] sm:$0xff] %v1986
            %2004 = vst [vmem:[%s1988 + $0x78] sm:$0xff] %v1987
            %s2005 = scalar_lea.vmem [#allocation4], %s415
            %v2006 = vld [vmem:[%s2005] sm:$0xff]
            %v2007 = vld [vmem:[%s2005 + $0x8] sm:$0xff]
            %v2008 = vld [vmem:[%s2005 + $0x10] sm:$0xff]
            %v2009 = vld [vmem:[%s2005 + $0x18] sm:$0xff]
            %v2010 = vld [vmem:[%s2005 + $0x20] sm:$0xff]
            %v2011 = vld [vmem:[%s2005 + $0x28] sm:$0xff]
            %v2012 = vld [vmem:[%s2005 + $0x30] sm:$0xff]
            %v2013 = vld [vmem:[%s2005 + $0x38] sm:$0xff]
            %v2014 = vld [vmem:[%s2005 + $0x40] sm:$0xff]
            %v2015 = vld [vmem:[%s2005 + $0x48] sm:$0xff]
            %v2016 = vld [vmem:[%s2005 + $0x50] sm:$0xff]
            %v2017 = vld [vmem:[%s2005 + $0x58] sm:$0xff]
            %v2018 = vld [vmem:[%s2005 + $0x60] sm:$0xff]
            %v2019 = vld [vmem:[%s2005 + $0x68] sm:$0xff]
            %v2020 = vld [vmem:[%s2005 + $0x70] sm:$0xff]
            %v2021 = vld [vmem:[%s2005 + $0x78] sm:$0xff]
            %2022 = vmatprep.subr.mxu0 0.0
            %2023 = vmatpush1.msra.mxu0 %v432
            %2024 = vmatprep.subr.mxu0 0.0
            %2025 = vmatpush1.msra.mxu0 %v431
            %2026 = vmatprep.subr.mxu0 0.0
            %2027 = vmatpush1.msra.mxu0 %v430
            %2028 = vmatprep.subr.mxu0 0.0
            %2029 = vmatpush1.msra.mxu0 %v429
            %2030 = vmatprep.subr.mxu0 0.0
            %2031 = vmatpush1.msra.mxu0 %v428
            %2032 = vmatprep.subr.mxu0 0.0
            %2033 = vmatpush1.msra.mxu0 %v427
            %2034 = vmatprep.subr.mxu0 0.0
            %2035 = vmatpush1.msra.mxu0 %v426
            %2036 = vmatprep.subr.mxu0 0.0
            %2037 = vmatpush1.msra.mxu0 %v425
            %2038 = vmatprep.subr.mxu0 0.0
            %2039 = vmatpush1.msra.mxu0 %v424
            %2040 = vmatprep.subr.mxu0 0.0
            %2041 = vmatpush1.msra.mxu0 %v423
            %2042 = vmatprep.subr.mxu0 0.0
            %2043 = vmatpush1.msra.mxu0 %v422
            %2044 = vmatprep.subr.mxu0 0.0
            %2045 = vmatpush1.msra.mxu0 %v421
            %2046 = vmatprep.subr.mxu0 0.0
            %2047 = vmatpush1.msra.mxu0 %v420
            %2048 = vmatprep.subr.mxu0 0.0
            %2049 = vmatpush1.msra.mxu0 %v419
            %2050 = vmatprep.subr.mxu0 0.0
            %2051 = vmatpush1.msra.mxu0 %v418
            %2052 = vmatprep.subr.mxu0 0.0
            %2053 = vmatpush1.msra.mxu0 %v417
            %2054 = vmatprep.subr.mxu0 0.0
            %2055 = vmatpush2.msra.mxu0 0.0
            %2056 = vmatprep.subr.mxu0 0.0
            %2057 = vmatpush2.msra.mxu0 0.0
            %2058 = vmatprep.subr.mxu0 0.0
            %2059 = vmatpush2.msra.mxu0 0.0
            %2060 = vmatprep.subr.mxu0 0.0
            %2061 = vmatpush2.msra.mxu0 0.0
            %2062 = vmatprep.subr.mxu0 0.0
            %2063 = vmatpush2.msra.mxu0 0.0
            %2064 = vmatprep.subr.mxu0 0.0
            %2065 = vmatpush2.msra.mxu0 0.0
            %2066 = vmatprep.subr.mxu0 0.0
            %2067 = vmatpush2.msra.mxu0 0.0
            %2068 = vmatprep.subr.mxu0 0.0
            %2069 = vmatpush2.msra.mxu0 0.0
            %2070 = vmatprep.subr.mxu0 0.0
            %2071 = vmatpush2.msra.mxu0 0.0
            %2072 = vmatprep.subr.mxu0 0.0
            %2073 = vmatpush2.msra.mxu0 0.0
            %2074 = vmatprep.subr.mxu0 0.0
            %2075 = vmatpush2.msra.mxu0 0.0
            %2076 = vmatprep.subr.mxu0 0.0
            %2077 = vmatpush2.msra.mxu0 0.0
            %2078 = vmatprep.subr.mxu0 0.0
            %2079 = vmatpush2.msra.mxu0 0.0
            %2080 = vmatprep.subr.mxu0 0.0
            %2081 = vmatpush2.msra.mxu0 0.0
            %2082 = vmatprep.subr.mxu0 0.0
            %2083 = vmatpush2.msra.mxu0 0.0
            %2084 = vmatprep.subr.mxu0 0.0
            %2085 = vmatpush2.msra.mxu0 0.0
            %2086 = vmatprep.mubr.f32.mxu0 0.0
            %2087 = vmatmul.mubr.f32.gmra.mxu0 %v1972
            %v2088 = vpop.f32.mrf.mxu0
            %v2089 = vadd.f32 0.0, %v2088
            %v2090 = vpop.f32.mrf.mxu0
            %2091 = vmatprep.mubr.f32.mxu0 0.0
            %2092 = vmatmul.mubr.f32.gmra.mxu0 %v1973
            %v2093 = vpop.f32.mrf.mxu0
            %v2094 = vadd.f32 0.0, %v2093
            %v2095 = vpop.f32.mrf.mxu0
            %2096 = vmatprep.mubr.f32.mxu0 0.0
            %2097 = vmatmul.mubr.f32.gmra.mxu0 %v1974
            %v2098 = vpop.f32.mrf.mxu0
            %v2099 = vadd.f32 0.0, %v2098
            %v2100 = vpop.f32.mrf.mxu0
            %2101 = vmatprep.mubr.f32.mxu0 0.0
            %2102 = vmatmul.mubr.f32.gmra.mxu0 %v1975
            %v2103 = vpop.f32.mrf.mxu0
            %v2104 = vadd.f32 0.0, %v2103
            %v2105 = vpop.f32.mrf.mxu0
            %2106 = vmatprep.mubr.f32.mxu0 0.0
            %2107 = vmatmul.mubr.f32.gmra.mxu0 %v1976
            %v2108 = vpop.f32.mrf.mxu0
            %v2109 = vadd.f32 0.0, %v2108
            %v2110 = vpop.f32.mrf.mxu0
            %2111 = vmatprep.mubr.f32.mxu0 0.0
            %2112 = vmatmul.mubr.f32.gmra.mxu0 %v1977
            %v2113 = vpop.f32.mrf.mxu0
            %v2114 = vadd.f32 0.0, %v2113
            %v2115 = vpop.f32.mrf.mxu0
            %2116 = vmatprep.mubr.f32.mxu0 0.0
            %2117 = vmatmul.mubr.f32.gmra.mxu0 %v1978
            %v2118 = vpop.f32.mrf.mxu0
            %v2119 = vadd.f32 0.0, %v2118
            %v2120 = vpop.f32.mrf.mxu0
            %2121 = vmatprep.mubr.f32.mxu0 0.0
            %2122 = vmatmul.mubr.f32.gmra.mxu0 %v1979
            %v2123 = vpop.f32.mrf.mxu0
            %v2124 = vadd.f32 0.0, %v2123
            %v2125 = vpop.f32.mrf.mxu0
            %2126 = vmatprep.mubr.f32.mxu0 0.0
            %2127 = vmatmul.mubr.f32.gmra.mxu0 %v1980
            %v2128 = vpop.f32.mrf.mxu0
            %v2129 = vadd.f32 0.0, %v2128
            %v2130 = vpop.f32.mrf.mxu0
            %2131 = vmatprep.mubr.f32.mxu0 0.0
            %2132 = vmatmul.mubr.f32.gmra.mxu0 %v1981
            %v2133 = vpop.f32.mrf.mxu0
            %v2134 = vadd.f32 0.0, %v2133
            %v2135 = vpop.f32.mrf.mxu0
            %2136 = vmatprep.mubr.f32.mxu0 0.0
            %2137 = vmatmul.mubr.f32.gmra.mxu0 %v1982
            %v2138 = vpop.f32.mrf.mxu0
            %v2139 = vadd.f32 0.0, %v2138
            %v2140 = vpop.f32.mrf.mxu0
            %2141 = vmatprep.mubr.f32.mxu0 0.0
            %2142 = vmatmul.mubr.f32.gmra.mxu0 %v1983
            %v2143 = vpop.f32.mrf.mxu0
            %v2144 = vadd.f32 0.0, %v2143
            %v2145 = vpop.f32.mrf.mxu0
            %2146 = vmatprep.mubr.f32.mxu0 0.0
            %2147 = vmatmul.mubr.f32.gmra.mxu0 %v1984
            %v2148 = vpop.f32.mrf.mxu0
            %v2149 = vadd.f32 0.0, %v2148
            %v2150 = vpop.f32.mrf.mxu0
            %2151 = vmatprep.mubr.f32.mxu0 0.0
            %2152 = vmatmul.mubr.f32.gmra.mxu0 %v1985
            %v2153 = vpop.f32.mrf.mxu0
            %v2154 = vadd.f32 0.0, %v2153
            %v2155 = vpop.f32.mrf.mxu0
            %2156 = vmatprep.mubr.f32.mxu0 0.0
            %2157 = vmatmul.mubr.f32.gmra.mxu0 %v1986
            %v2158 = vpop.f32.mrf.mxu0
            %v2159 = vadd.f32 0.0, %v2158
            %v2160 = vpop.f32.mrf.mxu0
            %2161 = vmatprep.mubr.f32.mxu0 0.0
            %2162 = vmatmul.mubr.f32.gmra.mxu0 %v1987
            %v2163 = vpop.f32.mrf.mxu0
            %v2164 = vadd.f32 0.0, %v2163
            %v2165 = vpop.f32.mrf.mxu0
            %2166 = vdwg.mxu0
            %v2167 = vadd.f32 %v2006, %v2089
            %v2168 = vadd.f32 %v2007, %v2094
            %v2169 = vadd.f32 %v2008, %v2099
            %v2170 = vadd.f32 %v2009, %v2104
            %v2171 = vadd.f32 %v2010, %v2109
            %v2172 = vadd.f32 %v2011, %v2114
            %v2173 = vadd.f32 %v2012, %v2119
            %v2174 = vadd.f32 %v2013, %v2124
            %v2175 = vadd.f32 %v2014, %v2129
            %v2176 = vadd.f32 %v2015, %v2134
            %v2177 = vadd.f32 %v2016, %v2139
            %v2178 = vadd.f32 %v2017, %v2144
            %v2179 = vadd.f32 %v2018, %v2149
            %v2180 = vadd.f32 %v2019, %v2154
            %v2181 = vadd.f32 %v2020, %v2159
            %v2182 = vadd.f32 %v2021, %v2164
            %2183 = vst [vmem:[%s2005] sm:$0xff] %v2167
            %2184 = vst [vmem:[%s2005 + $0x8] sm:$0xff] %v2168
            %2185 = vst [vmem:[%s2005 + $0x10] sm:$0xff] %v2169
            %2186 = vst [vmem:[%s2005 + $0x18] sm:$0xff] %v2170
            %2187 = vst [vmem:[%s2005 + $0x20] sm:$0xff] %v2171
            %2188 = vst [vmem:[%s2005 + $0x28] sm:$0xff] %v2172
            %2189 = vst [vmem:[%s2005 + $0x30] sm:$0xff] %v2173
            %2190 = vst [vmem:[%s2005 + $0x38] sm:$0xff] %v2174
            %2191 = vst [vmem:[%s2005 + $0x40] sm:$0xff] %v2175
            %2192 = vst [vmem:[%s2005 + $0x48] sm:$0xff] %v2176
            %2193 = vst [vmem:[%s2005 + $0x50] sm:$0xff] %v2177
            %2194 = vst [vmem:[%s2005 + $0x58] sm:$0xff] %v2178
            %2195 = vst [vmem:[%s2005 + $0x60] sm:$0xff] %v2179
            %2196 = vst [vmem:[%s2005 + $0x68] sm:$0xff] %v2180
            %2197 = vst [vmem:[%s2005 + $0x70] sm:$0xff] %v2181
            %2198 = vst [vmem:[%s2005 + $0x78] sm:$0xff] %v2182
            %v2199 = vld [vmem:[%s2005] sm:$0xff]
            %v2200 = vld [vmem:[%s2005 + $0x8] sm:$0xff]
            %v2201 = vld [vmem:[%s2005 + $0x10] sm:$0xff]
            %v2202 = vld [vmem:[%s2005 + $0x18] sm:$0xff]
            %v2203 = vld [vmem:[%s2005 + $0x20] sm:$0xff]
            %v2204 = vld [vmem:[%s2005 + $0x28] sm:$0xff]
            %v2205 = vld [vmem:[%s2005 + $0x30] sm:$0xff]
            %v2206 = vld [vmem:[%s2005 + $0x38] sm:$0xff]
            %v2207 = vld [vmem:[%s2005 + $0x40] sm:$0xff]
            %v2208 = vld [vmem:[%s2005 + $0x48] sm:$0xff]
            %v2209 = vld [vmem:[%s2005 + $0x50] sm:$0xff]
            %v2210 = vld [vmem:[%s2005 + $0x58] sm:$0xff]
            %v2211 = vld [vmem:[%s2005 + $0x60] sm:$0xff]
            %v2212 = vld [vmem:[%s2005 + $0x68] sm:$0xff]
            %v2213 = vld [vmem:[%s2005 + $0x70] sm:$0xff]
            %v2214 = vld [vmem:[%s2005 + $0x78] sm:$0xff]
            %v2215 = vld [vmem:[%s7] sm:$0x1]
            %v2217 = vlaneseq
            %v2218 = vshrl.u32 %v2217, 7
            %v2219 = vsub.s32 0, %v2218
            %v2220 = vrot.slane %v2215, %v2219
            %v2222 = vadd.f32 %v2199, %v2220
            %v2223 = vadd.f32 %v2200, %v2220
            %v2224 = vadd.f32 %v2201, %v2220
            %v2225 = vadd.f32 %v2202, %v2220
            %v2226 = vadd.f32 %v2203, %v2220
            %v2227 = vadd.f32 %v2204, %v2220
            %v2228 = vadd.f32 %v2205, %v2220
            %v2229 = vadd.f32 %v2206, %v2220
            %v2230 = vadd.f32 %v2207, %v2220
            %v2231 = vadd.f32 %v2208, %v2220
            %v2232 = vadd.f32 %v2209, %v2220
            %v2233 = vadd.f32 %v2210, %v2220
            %v2234 = vadd.f32 %v2211, %v2220
            %v2235 = vadd.f32 %v2212, %v2220
            %v2236 = vadd.f32 %v2213, %v2220
            %v2237 = vadd.f32 %v2214, %v2220
            %v2238 = vmax.f32 %v2222, 0.0
            %v2239 = vmax.f32 %v2223, 0.0
            %v2240 = vmax.f32 %v2224, 0.0
            %v2241 = vmax.f32 %v2225, 0.0
            %v2242 = vmax.f32 %v2226, 0.0
            %v2243 = vmax.f32 %v2227, 0.0
            %v2244 = vmax.f32 %v2228, 0.0
            %v2245 = vmax.f32 %v2229, 0.0
            %v2246 = vmax.f32 %v2230, 0.0
            %v2247 = vmax.f32 %v2231, 0.0
            %v2248 = vmax.f32 %v2232, 0.0
            %v2249 = vmax.f32 %v2233, 0.0
            %v2250 = vmax.f32 %v2234, 0.0
            %v2251 = vmax.f32 %v2235, 0.0
            %v2252 = vmax.f32 %v2236, 0.0
            %v2253 = vmax.f32 %v2237, 0.0
            %2254 = vst [vmem:[#allocation15] sm:$0xff] %v2238
            %2255 = vst [vmem:[#allocation15 + $0x8] sm:$0xff] %v2239
            %2256 = vst [vmem:[#allocation15 + $0x10] sm:$0xff] %v2240
            %2257 = vst [vmem:[#allocation15 + $0x18] sm:$0xff] %v2241
            %2258 = vst [vmem:[#allocation15 + $0x20] sm:$0xff] %v2242
            %2259 = vst [vmem:[#allocation15 + $0x28] sm:$0xff] %v2243
            %2260 = vst [vmem:[#allocation15 + $0x30] sm:$0xff] %v2244
            %2261 = vst [vmem:[#allocation15 + $0x38] sm:$0xff] %v2245
            %2262 = vst [vmem:[#allocation15 + $0x40] sm:$0xff] %v2246
            %2263 = vst [vmem:[#allocation15 + $0x48] sm:$0xff] %v2247
            %2264 = vst [vmem:[#allocation15 + $0x50] sm:$0xff] %v2248
            %2265 = vst [vmem:[#allocation15 + $0x58] sm:$0xff] %v2249
            %2266 = vst [vmem:[#allocation15 + $0x60] sm:$0xff] %v2250
            %2267 = vst [vmem:[#allocation15 + $0x68] sm:$0xff] %v2251
            %2268 = vst [vmem:[#allocation15 + $0x70] sm:$0xff] %v2252
            %2269 = vst [vmem:[#allocation15 + $0x78] sm:$0xff] %v2253
          $region100: #{tpu_custom_call.1} parent=91 // pred_fallthru
            _
        $region92: #{tpu_custom_call.1} parent=51 // pred_fallthru
          _
        // Predicated region
        $region101: #{tpu_custom_call.1} parent=51 // pred_check
          %p2270 = pneg %p245
        $region102: #{tpu_custom_call.1} parent=51 // pred_check_branch
          %2272 = sbr.rel (%p2270) target = $region104
        $region103: #{tpu_custom_call.1} parent=51 // pred_region
          %s2273 = smul.u32 16, %s29
          %s2275 = ssub.s32 2048, 2048
          %2276 = vsyncadd [#allocation8], %s2275
          %s2277 = smul.addr %s2273, 128
          %s2278 = scalar_lea.hbm %s8, %s2277
          %s2279 = sshll.u32 [#allocation15], 4
          %s2280 = int_to_ptr.vmem [resolvable:$true] %s2279
          %2285 = dma.vmem_to_hbm [thread:$0]  %s2280, 2048, %s2278, [#allocation8], 128, 128, 8
        $region104: #{tpu_custom_call.1} parent=51 // pred_fallthru
          _
        // Predicated region
        $region105: #{tpu_custom_call.1} parent=51 // pred_check
          %p2286 = pneg %p245
        $region106: #{tpu_custom_call.1} parent=51 // pred_check_branch
          %2288 = sbr.rel (%p2286) target = $region108
        $region107: #{tpu_custom_call.1} parent=51 // pred_region
          %2289 = dma.done [#allocation8], 2048
        $region108: #{tpu_custom_call.1} parent=51 // pred_fallthru
          _
      $region52: #{tpu_custom_call.1} parent=5 // pred_fallthru
        _
      %p2290 = scmp.le.s32.totalorder 2, %s18
      // Predicated region
      $region109: #{tpu_custom_call.1} parent=5 // pred_check
        %p2291 = pneg %p2290
      $region110: #{tpu_custom_call.1} parent=5 // pred_check_branch
        %2293 = sbr.rel (%p2291) target = $region112
      $region111: #{tpu_custom_call.1} parent=5 // pred_region
        %s2294 = ssub.s32 %s18, 2
      $region112: #{tpu_custom_call.1} parent=5 // pred_fallthru
        _
    $region6: #{tpu_custom_call.1} parent=1 // loop_footer
      %s22 = sadd.s32 1, %s18
    $region7: #{tpu_custom_call.1} parent=1 // loop_footer_branch
      %17 = sbr.rel target = $region3
    $region8: #{tpu_custom_call.1} parent=1 // loop_exit
      _
    %2295 = vsyncpa [#allocation7], 1
    %s2296 = scalar_lea.sflag [#allocation7], 1
    %2297 = vsyncpa %s2296, 1
    %2298 = vsyncpa [#allocation10], 1
    %2299 = vsyncpa [#allocation13], 1
    %2300 = vsyncpa [#allocation8], 1
    %s2301 = scalar_lea.sflag [#allocation8], 1
    %2302 = vsyncpa %s2301, 1

</llo_original>
